<compile_context>
chip_gen: v5e
topology: v5e:2x2
jax: 0.10.0
libtpu: 0.0.40
codegen_flags: <defaults>
</compile_context>

<pallas_src>
import math
from functools import partial

import jax
import jax.numpy as jnp
from jax.experimental import pallas as pl
from jax.experimental.pallas import tpu as pltpu

_VMEM = pl.BlockSpec(memory_space=pltpu.MemorySpace.VMEM)


# ----------------------------- fused Pallas kernel ----------------------------

def _fused_forward_kernel(cfg,
                          p1_ref, w1_ref, b1_ref, w2_ref, b2_ref, w3_ref, b3_ref,
                          whid_ref, bhid_ref, wout_ref, bout_ref, sup_ref,
                          q_ref):
    (B, OH1, OW1, OC1,
     KH2, KW2, S2, OH2, OW2, OC2,
     KH3, KW3, OH3, OW3, OC3,
     A, N) = cfg

    def mm(a, b):
        return jnp.dot(a, b, preferred_element_type=jnp.float32)

    # ---- conv1 + BN + ReLU : ONE im2col matmul over all output positions ----
    # p1_ref: (B*OW1*OH1, KH1*KW1*C), row = (b, ow, oh), feature = (ki, kj, c).
    y1f = jnp.maximum(mm(p1_ref[...], w1_ref[...]) + b1_ref[...], 0.0)  # (B*OW1*OH1, OC1)

    # Re-pack to the layout conv2 slices: row = (b, oh1), lane = (ow1, c).
    # Only aligned (OH1, OC1) sublane slices + lane concat (both proven).
    col_blocks = []
    for ow in range(OW1):
        rows = [y1f[(bb * OW1 + ow) * OH1:(bb * OW1 + ow) * OH1 + OH1, :]
                for bb in range(B)]
        col_blocks.append(rows[0] if B == 1 else jnp.concatenate(rows, axis=0))
    y1 = jnp.concatenate(col_blocks, axis=-1)                    # (B*OH1, OW1*OC1)

    # ---- conv2 + BN + ReLU (stride S2): ONE matmul over all positions -------
    patch_rows = []                                              # rows = (pos2, b)
    for oh in range(OH2):
        for ow in range(OW2):
            rows = []
            for bb in range(B):
                parts = []
                for ki in range(KH2):
                    r = bb * OH1 + S2 * oh + ki
                    c0 = OC1 * S2 * ow
                    parts.append(y1[r:r + 1, c0:c0 + KW2 * OC1])     # (1, KW2*OC1)
                rows.append(jnp.concatenate(parts, axis=-1))          # (1, KH2*KW2*OC1)
            patch_rows.append(jnp.concatenate(rows, axis=0))          # (B, KH2*KW2*OC1)
    p2 = jnp.concatenate(patch_rows, axis=0)                          # (OH2*OW2*B, .)
    y2 = jnp.maximum(mm(p2, w2_ref[...]) + b2_ref[...], 0.0)          # (OH2*OW2*B, OC2)

    # ---- conv3 + BN + ReLU (stride 1): ONE matmul over all positions --------
    p3_blocks = []                                                    # rows = (pos3, b)
    for oh in range(OH3):
        for ow in range(OW3):
            parts = []
            for ki in range(KH3):
                for kj in range(KW3):
                    pos = (oh + ki) * OW2 + (ow + kj)
                    parts.append(y2[pos * B:pos * B + B, :])          # (B, OC2)
            p3_blocks.append(jnp.concatenate(parts, axis=-1))         # (B, KH3*KW3*OC2)
    p3 = p3_blocks[0] if len(p3_blocks) == 1 else jnp.concatenate(p3_blocks, axis=0)
    y3 = jnp.maximum(mm(p3, w3_ref[...]) + b3_ref[...], 0.0)          # (OH3*OW3*B, OC3)

    # ---- flatten to feature (B, hidden), columns in (h, w, c) order ----------
    sp3 = OH3 * OW3
    if sp3 == 1:
        feature = y3
    else:
        feature = jnp.concatenate(
            [y3[s * B:(s + 1) * B, :] for s in range(sp3)], axis=-1)

    # ---- dueling noisy head: 2 fused matmuls ---------------------------------
    # whid = [wah | wvh] -> hid = [adv_hid | val_hid]
    hid = jnp.maximum(mm(feature, whid_ref[...]) + bhid_ref[...], 0.0)   # (B, 2*HID)
    # wout is block-diagonal: [[wa, 0], [0, wv]] -> av = [adv | val]
    av = mm(hid, wout_ref[...]) + bout_ref[...]                          # (B, A*N + N)
    adv = av[:, :A * N]                                                  # lane = a*N + n
    val = av[:, A * N:A * N + N]                                         # (B, N)

    # advantage.mean(dim=actions) via lane-block sums (no in-kernel reshape)
    adv_sum = adv[:, 0:N]
    for a in range(1, A):
        adv_sum = adv_sum + adv[:, a * N:(a + 1) * N]
    centered_val = val - adv_sum * (1.0 / A)                             # (B, N)
    q_atoms = adv + jnp.concatenate([centered_val] * A, axis=-1)         # (B, A*N)

    # per-action softmax with ONE exp pass over the full (B, A*N) tile
    bsz = q_atoms.shape[0]
    maxes = [jnp.max(q_atoms[:, a * N:(a + 1) * N], axis=-1, keepdims=True)
             for a in range(A)]
    m_full = jnp.concatenate([jnp.broadcast_to(m, (bsz, N)) for m in maxes],
                             axis=-1)
    e = jnp.exp(q_atoms - m_full)                                        # one EUP pass

    sup = sup_ref[...]                                                   # (1, N)
    q_cols = []
    for a in range(A):
        ea = e[:, a * N:(a + 1) * N]
        inv = pl.reciprocal(jnp.sum(ea, axis=-1, keepdims=True), approx=True)
        dist = jnp.maximum(ea * inv, 0.001)                              # clamp(min=0.001)
        q_cols.append(jnp.sum(dist * sup, axis=-1, keepdims=True))       # (B, 1)
    q_ref[...] = jnp.concatenate(q_cols, axis=-1)                        # single store


# ------------------------------ host-side glue --------------------------------

def fold_conv_bn(w, b, gamma, beta, mean, var, eps=1e-5):
    scale = gamma / jnp.sqrt(var + eps)
    w_fold = w * scale[:, None, None, None]
    b_fold = (b - mean) * scale + beta
    return w_fold, b_fold


def conv_weight_kxoc(w):
    """(oc, ic, kh, kw) -> (kh*kw*ic, oc), matching the kernel's (ki, kj, c) order."""
    return jnp.transpose(w, (2, 3, 1, 0)).reshape(-1, w.shape[0])


def build_conv1_patches(x_nhwc, kh, kw, stride):
    """NHWC im2col: -> (B*OW*OH, kh*kw*C), row = (b, ow, oh), feature = (ki, kj, c)."""
    bsz, h, w, c = x_nhwc.shape
    oh = (h - kh) // stride + 1
    ow = (w - kw) // stride + 1
    wins = []
    for ki in range(kh):
        for kj in range(kw):
            wins.append(x_nhwc[:, ki:ki + stride * (oh - 1) + 1:stride,
                               kj:kj + stride * (ow - 1) + 1:stride, :])
    p = jnp.stack(wins, axis=3)                       # (B, oh, ow, kh*kw, C)
    p = p.reshape(bsz, oh, ow, kh * kw * c)           # feature order (ki, kj, c)
    p = jnp.transpose(p, (0, 2, 1, 3))                # (B, ow, oh, K)
    p = p.reshape(bsz * ow * oh, kh * kw * c)         # row = (b, ow, oh)
    return p, oh, ow


def convnet_forward(x_nhwc, params, support, out_dim, atom_size):
    x = x_nhwc.astype(jnp.float32)
    bsz, _, _, cin = x.shape

    w1, b1, g1, be1, m1, v1 = params["conv1"]
    w2, b2, g2, be2, m2, v2 = params["conv2"]
    w3, b3, g3, be3, m3, v3 = params["conv3"]
    w1f, b1f = fold_conv_bn(w1, b1, g1, be1, m1, v1)
    w2f, b2f = fold_conv_bn(w2, b2, g2, be2, m2, v2)
    w3f, b3f = fold_conv_bn(w3, b3, g3, be3, m3, v3)

    oc1, _, kh1, kw1 = w1.shape
    oc2, _, kh2, kw2 = w2.shape
    oc3, _, kh3, kw3 = w3.shape
    s1, s2, s3 = 4, 2, 1

    p1, oh1, ow1 = build_conv1_patches(x, kh1, kw1, s1)
    oh2 = (oh1 - kh2) // s2 + 1
    ow2 = (ow1 - kw2) // s2 + 1
    oh3 = (oh2 - kh3) // s3 + 1
    ow3 = (ow2 - kw3) // s3 + 1
    hidden = oh3 * ow3 * oc3

    wah, bah = params["adv_hid"]
    wvh, bvh = params["val_hid"]
    wa, ba = params["adv"]
    wv, bv = params["val"]

    def nchw_cols_to_nhwc(wm):
        # PyTorch flattens `feature` in NCHW (c, h, w) order; the kernel produces
        # (h, w, c) order.  Identity when the conv3 output is 1x1 (this config).
        sp = oh3 * ow3
        if sp == 1:
            return wm
        return wm.reshape(-1, oc3, sp).transpose(0, 2, 1).reshape(wm.shape[0], oc3 * sp)

    # Fuse adv/val hidden layers into one matmul: whid = [wah.T | wvh.T]
    wah_k = nchw_cols_to_nhwc(wah).T                       # (hidden, hidden)
    wvh_k = nchw_cols_to_nhwc(wvh).T                       # (hidden, hidden)
    whid = jnp.concatenate([wah_k, wvh_k], axis=1)         # (hidden, 2*hidden)
    bhid = jnp.concatenate([bah, bvh]).reshape(1, -1)      # (1, 2*hidden)

    # Fuse adv/val output layers into one matmul via a block-diagonal weight.
    an = out_dim * atom_size
    wa_k, wv_k = wa.T, wv.T                                # (hidden, an), (hidden, N)
    wout = jnp.concatenate(
        [jnp.concatenate([wa_k, jnp.zeros((hidden, atom_size), jnp.float32)], axis=1),
         jnp.concatenate([jnp.zeros((hidden, an), jnp.float32), wv_k], axis=1)],
        axis=0)                                            # (2*hidden, an + N)
    bout = jnp.concatenate([ba, bv]).reshape(1, -1)        # (1, an + N)

    cfg = (bsz, oh1, ow1, oc1,
           kh2, kw2, s2, oh2, ow2, oc2,
           kh3, kw3, oh3, ow3, oc3,
           out_dim, atom_size)

    return pl.pallas_call(
        partial(_fused_forward_kernel, cfg),
        out_shape=jax.ShapeDtypeStruct((bsz, out_dim), jnp.float32),
        in_specs=[_VMEM] * 12,
        out_specs=_VMEM,
    )(p1,
      conv_weight_kxoc(w1f), b1f.reshape(1, -1),
      conv_weight_kxoc(w2f), b2f.reshape(1, -1),
      conv_weight_kxoc(w3f), b3f.reshape(1, -1),
      whid, bhid, wout, bout,
      support.reshape(1, -1))


# Independent pure-JAX reference (lax.conv + explicit BN) for a sanity check.
def convnet_reference(x_nhwc, params, support, out_dim, atom_size):
    x = jnp.transpose(x_nhwc, (0, 3, 1, 2)).astype(jnp.float32)
    for name, stride in (("conv1", 4), ("conv2", 2), ("conv3", 1)):
        w, b, g, be, m, v = params[name]
        y = jax.lax.conv_general_dilated(
            x, w, window_strides=(stride, stride), padding="VALID",
            dimension_numbers=("NCHW", "OIHW", "NCHW"))
        y = y + b[None, :, None, None]
        scale = (g / jnp.sqrt(v + 1e-5))[None, :, None, None]
        y = (y - m[None, :, None, None]) * scale + be[None, :, None, None]
        x = jnp.maximum(y, 0.0)
    feature = x.reshape(x.shape[0], -1)
    wah, bah = params["adv_hid"]
    wvh, bvh = params["val_hid"]
    wa, ba = params["adv"]
    wv, bv = params["val"]
    adv_hid = jnp.maximum(feature @ wah.T + bah, 0.0)
    val_hid = jnp.maximum(feature @ wvh.T + bvh, 0.0)
    adv = (adv_hid @ wa.T + ba).reshape(-1, out_dim, atom_size)
    val = (val_hid @ wv.T + bv).reshape(-1, 1, atom_size)
    q_atoms = val + adv - adv.mean(axis=1, keepdims=True)
    dist = jax.nn.softmax(q_atoms, axis=-1)
    dist = jnp.maximum(dist, 0.001)
    return jnp.sum(dist * support, axis=2)


# ------------------------- deterministic parameter init -----------------------

def conv_init(key, oc, ic, kh, kw):
    k = 1.0 / math.sqrt(ic * kh * kw)
    k1, k2 = jax.random.split(key)
    w = jax.random.uniform(k1, (oc, ic, kh, kw), jnp.float32, -k, k)
    b = jax.random.uniform(k2, (oc,), jnp.float32, -k, k)
    gamma = jnp.ones((oc,), jnp.float32)
    beta = jnp.zeros((oc,), jnp.float32)
    mean = jnp.zeros((oc,), jnp.float32)
    var = jnp.ones((oc,), jnp.float32)
    return (w, b, gamma, beta, mean, var)


def _scale_noise(key, size):
    x = jax.random.normal(key, (size,), jnp.float32)
    return jnp.sign(x) * jnp.sqrt(jnp.abs(x))


def noisy_linear_init(key, in_f, out_f, std_init=0.5):
    """Returns effective (W, b) with factorized gaussian noise already applied."""
    mu_range = 1.0 / math.sqrt(in_f)
    k1, k2, k3, k4 = jax.random.split(key, 4)
    w_mu = jax.random.uniform(k1, (out_f, in_f), jnp.float32, -mu_range, mu_range)
    w_sigma = jnp.full((out_f, in_f), std_init / math.sqrt(in_f), jnp.float32)
    b_mu = jax.random.uniform(k2, (out_f,), jnp.float32, -mu_range, mu_range)
    b_sigma = jnp.full((out_f,), std_init / math.sqrt(out_f), jnp.float32)
    eps_in = _scale_noise(k3, in_f)
    eps_out = _scale_noise(k4, out_f)
    w_eff = w_mu + w_sigma * jnp.outer(eps_out, eps_in)
    b_eff = b_mu + b_sigma * eps_out
    return (w_eff, b_eff)


def conv2d_size_out(size, kernel_size, stride):
    return (size - (kernel_size - 1) - 1) // stride + 1


# ----------------------------------- main -------------------------------------

if __name__ == "__main__":
    # small shapes: in_dim = [H, W, C] = [36, 36, 4], out_dim=4 actions, 8 atoms
    B, H, W, C = 2, 36, 36, 4
    out_dim, atom_size = 4, 8

    conv_w = conv2d_size_out(conv2d_size_out(conv2d_size_out(W, 8, 4), 4, 2), 3, 1)
    conv_h = conv2d_size_out(conv2d_size_out(conv2d_size_out(H, 8, 4), 4, 2), 3, 1)
    hidden = conv_w * conv_h * 32

    root = jax.random.PRNGKey(0)
    keys = jax.random.split(root, 8)
    params = {
        "conv1": conv_init(keys[0], 16, C, 8, 8),
        "conv2": conv_init(keys[1], 32, 16, 4, 4),
        "conv3": conv_init(keys[2], 32, 32, 3, 3),
        "adv_hid": noisy_linear_init(keys[3], hidden, hidden),
        "adv": noisy_linear_init(keys[4], hidden, out_dim * atom_size),
        "val_hid": noisy_linear_init(keys[5], hidden, hidden),
        "val": noisy_linear_init(keys[6], hidden, atom_size),
    }
    support = jnp.linspace(0.0, 10.0, atom_size, dtype=jnp.float32)

    x = jax.random.normal(keys[7], (B, H, W, C), jnp.float32)

    fwd = jax.jit(convnet_forward, static_argnums=(3, 4))
    q = jax.block_until_ready(fwd(x, params, support, out_dim, atom_size))

    q_ref = jax.block_until_ready(
        convnet_reference(x, params, support, out_dim, atom_size))

    assert q.shape == (B, out_dim), q.shape
    assert jnp.all(jnp.isfinite(q))
    assert jnp.allclose(q, q_ref, rtol=5e-2, atol=5e-2), (q, q_ref)

    print("KERNEL_OK")
</pallas_src>

<mosaic_0001>
module attributes {stable_mosaic.version = 11 : i64} {
  func.func @_fused_forward_kernel(%arg0: memref<128x256xf32, #tpu.memory_space<vmem>>, %arg1: memref<256x16xf32, #tpu.memory_space<vmem>>, %arg2: memref<1x16xf32, #tpu.memory_space<vmem>>, %arg3: memref<256x32xf32, #tpu.memory_space<vmem>>, %arg4: memref<1x32xf32, #tpu.memory_space<vmem>>, %arg5: memref<288x32xf32, #tpu.memory_space<vmem>>, %arg6: memref<1x32xf32, #tpu.memory_space<vmem>>, %arg7: memref<32x64xf32, #tpu.memory_space<vmem>>, %arg8: memref<1x64xf32, #tpu.memory_space<vmem>>, %arg9: memref<64x40xf32, #tpu.memory_space<vmem>>, %arg10: memref<1x40xf32, #tpu.memory_space<vmem>>, %arg11: memref<1x8xf32, #tpu.memory_space<vmem>>, %arg12: memref<2x4xf32, #tpu.memory_space<vmem>>) attributes {dimension_semantics = [], scalar_prefetch = 0 : i64, scratch_operands = 0 : i64, tpu.core_type = #tpu.core_type<tc>} {
    %c0 = arith.constant 0 : index
    %c0_0 = arith.constant 0 : index
    %0 = vector.load %arg0[%c0, %c0_0] : memref<128x256xf32, #tpu.memory_space<vmem>>, vector<128x256xf32>
    %c0_1 = arith.constant 0 : index
    %c0_2 = arith.constant 0 : index
    %1 = vector.load %arg1[%c0_1, %c0_2] : memref<256x16xf32, #tpu.memory_space<vmem>>, vector<256x16xf32>
    %cst = arith.constant dense<0.000000e+00> : vector<128x16xf32>
    %2 = tpu.matmul %0, %1, %cst {dimension_numbers = #tpu.dot_dimension_numbers<[1], [0], [0], [1], [0, 0, 1, 1], [], []>} : vector<128x256xf32>, vector<256x16xf32>, vector<128x16xf32> -> vector<128x16xf32>
    %c0_3 = arith.constant 0 : index
    %c0_4 = arith.constant 0 : index
    %3 = vector.load %arg2[%c0_3, %c0_4] : memref<1x16xf32, #tpu.memory_space<vmem>>, vector<1x16xf32>
    %4 = vector.broadcast %3 : vector<1x16xf32> to vector<128x16xf32>
    %5 = arith.addf %2, %4 : vector<128x16xf32>
    %cst_5 = arith.constant 0.000000e+00 : f32
    %6 = vector.broadcast %cst_5 : f32 to vector<128x16xf32>
    %7 = arith.maximumf %5, %6 : vector<128x16xf32>
    %8 = vector.extract_strided_slice %7 {offsets = [0, 0], sizes = [8, 16], strides = [1, 1]} : vector<128x16xf32> to vector<8x16xf32>
    %9 = vector.extract_strided_slice %7 {offsets = [64, 0], sizes = [8, 16], strides = [1, 1]} : vector<128x16xf32> to vector<8x16xf32>
    %10 = tpu.concatenate %8, %9 in 0 : vector<8x16xf32>, vector<8x16xf32> -> vector<16x16xf32>
    %11 = vector.extract_strided_slice %7 {offsets = [8, 0], sizes = [8, 16], strides = [1, 1]} : vector<128x16xf32> to vector<8x16xf32>
    %12 = vector.extract_strided_slice %7 {offsets = [72, 0], sizes = [8, 16], strides = [1, 1]} : vector<128x16xf32> to vector<8x16xf32>
    %13 = tpu.concatenate %11, %12 in 0 : vector<8x16xf32>, vector<8x16xf32> -> vector<16x16xf32>
    %14 = vector.extract_strided_slice %7 {offsets = [16, 0], sizes = [8, 16], strides = [1, 1]} : vector<128x16xf32> to vector<8x16xf32>
    %15 = vector.extract_strided_slice %7 {offsets = [80, 0], sizes = [8, 16], strides = [1, 1]} : vector<128x16xf32> to vector<8x16xf32>
    %16 = tpu.concatenate %14, %15 in 0 : vector<8x16xf32>, vector<8x16xf32> -> vector<16x16xf32>
    %17 = vector.extract_strided_slice %7 {offsets = [24, 0], sizes = [8, 16], strides = [1, 1]} : vector<128x16xf32> to vector<8x16xf32>
    %18 = vector.extract_strided_slice %7 {offsets = [88, 0], sizes = [8, 16], strides = [1, 1]} : vector<128x16xf32> to vector<8x16xf32>
    %19 = tpu.concatenate %17, %18 in 0 : vector<8x16xf32>, vector<8x16xf32> -> vector<16x16xf32>
    %20 = vector.extract_strided_slice %7 {offsets = [32, 0], sizes = [8, 16], strides = [1, 1]} : vector<128x16xf32> to vector<8x16xf32>
    %21 = vector.extract_strided_slice %7 {offsets = [96, 0], sizes = [8, 16], strides = [1, 1]} : vector<128x16xf32> to vector<8x16xf32>
    %22 = tpu.concatenate %20, %21 in 0 : vector<8x16xf32>, vector<8x16xf32> -> vector<16x16xf32>
    %23 = vector.extract_strided_slice %7 {offsets = [40, 0], sizes = [8, 16], strides = [1, 1]} : vector<128x16xf32> to vector<8x16xf32>
    %24 = vector.extract_strided_slice %7 {offsets = [104, 0], sizes = [8, 16], strides = [1, 1]} : vector<128x16xf32> to vector<8x16xf32>
    %25 = tpu.concatenate %23, %24 in 0 : vector<8x16xf32>, vector<8x16xf32> -> vector<16x16xf32>
    %26 = vector.extract_strided_slice %7 {offsets = [48, 0], sizes = [8, 16], strides = [1, 1]} : vector<128x16xf32> to vector<8x16xf32>
    %27 = vector.extract_strided_slice %7 {offsets = [112, 0], sizes = [8, 16], strides = [1, 1]} : vector<128x16xf32> to vector<8x16xf32>
    %28 = tpu.concatenate %26, %27 in 0 : vector<8x16xf32>, vector<8x16xf32> -> vector<16x16xf32>
    %29 = vector.extract_strided_slice %7 {offsets = [56, 0], sizes = [8, 16], strides = [1, 1]} : vector<128x16xf32> to vector<8x16xf32>
    %30 = vector.extract_strided_slice %7 {offsets = [120, 0], sizes = [8, 16], strides = [1, 1]} : vector<128x16xf32> to vector<8x16xf32>
    %31 = tpu.concatenate %29, %30 in 0 : vector<8x16xf32>, vector<8x16xf32> -> vector<16x16xf32>
    %32 = tpu.concatenate %10, %13, %16, %19, %22, %25, %28, %31 in 1 : vector<16x16xf32>, vector<16x16xf32>, vector<16x16xf32>, vector<16x16xf32>, vector<16x16xf32>, vector<16x16xf32>, vector<16x16xf32>, vector<16x16xf32> -> vector<16x128xf32>
    %33 = vector.extract_strided_slice %32 {offsets = [0, 0], sizes = [1, 64], strides = [1, 1]} : vector<16x128xf32> to vector<1x64xf32>
    %34 = vector.extract_strided_slice %32 {offsets = [1, 0], sizes = [1, 64], strides = [1, 1]} : vector<16x128xf32> to vector<1x64xf32>
    %35 = vector.extract_strided_slice %32 {offsets = [2, 0], sizes = [1, 64], strides = [1, 1]} : vector<16x128xf32> to vector<1x64xf32>
    %36 = vector.extract_strided_slice %32 {offsets = [3, 0], sizes = [1, 64], strides = [1, 1]} : vector<16x128xf32> to vector<1x64xf32>
    %37 = tpu.concatenate %33, %34, %35, %36 in 1 : vector<1x64xf32>, vector<1x64xf32>, vector<1x64xf32>, vector<1x64xf32> -> vector<1x256xf32>
    %38 = vector.extract_strided_slice %32 {offsets = [8, 0], sizes = [1, 64], strides = [1, 1]} : vector<16x128xf32> to vector<1x64xf32>
    %39 = vector.extract_strided_slice %32 {offsets = [9, 0], sizes = [1, 64], strides = [1, 1]} : vector<16x128xf32> to vector<1x64xf32>
    %40 = vector.extract_strided_slice %32 {offsets = [10, 0], sizes = [1, 64], strides = [1, 1]} : vector<16x128xf32> to vector<1x64xf32>
    %41 = vector.extract_strided_slice %32 {offsets = [11, 0], sizes = [1, 64], strides = [1, 1]} : vector<16x128xf32> to vector<1x64xf32>
    %42 = tpu.concatenate %38, %39, %40, %41 in 1 : vector<1x64xf32>, vector<1x64xf32>, vector<1x64xf32>, vector<1x64xf32> -> vector<1x256xf32>
    %43 = tpu.concatenate %37, %42 in 0 : vector<1x256xf32>, vector<1x256xf32> -> vector<2x256xf32>
    %44 = vector.extract_strided_slice %32 {offsets = [0, 32], sizes = [1, 64], strides = [1, 1]} : vector<16x128xf32> to vector<1x64xf32>
    %45 = vector.extract_strided_slice %32 {offsets = [1, 32], sizes = [1, 64], strides = [1, 1]} : vector<16x128xf32> to vector<1x64xf32>
    %46 = vector.extract_strided_slice %32 {offsets = [2, 32], sizes = [1, 64], strides = [1, 1]} : vector<16x128xf32> to vector<1x64xf32>
    %47 = vector.extract_strided_slice %32 {offsets = [3, 32], sizes = [1, 64], strides = [1, 1]} : vector<16x128xf32> to vector<1x64xf32>
    %48 = tpu.concatenate %44, %45, %46, %47 in 1 : vector<1x64xf32>, vector<1x64xf32>, vector<1x64xf32>, vector<1x64xf32> -> vector<1x256xf32>
    %49 = vector.extract_strided_slice %32 {offsets = [8, 32], sizes = [1, 64], strides = [1, 1]} : vector<16x128xf32> to vector<1x64xf32>
    %50 = vector.extract_strided_slice %32 {offsets = [9, 32], sizes = [1, 64], strides = [1, 1]} : vector<16x128xf32> to vector<1x64xf32>
    %51 = vector.extract_strided_slice %32 {offsets = [10, 32], sizes = [1, 64], strides = [1, 1]} : vector<16x128xf32> to vector<1x64xf32>
    %52 = vector.extract_strided_slice %32 {offsets = [11, 32], sizes = [1, 64], strides = [1, 1]} : vector<16x128xf32> to vector<1x64xf32>
    %53 = tpu.concatenate %49, %50, %51, %52 in 1 : vector<1x64xf32>, vector<1x64xf32>, vector<1x64xf32>, vector<1x64xf32> -> vector<1x256xf32>
    %54 = tpu.concatenate %48, %53 in 0 : vector<1x256xf32>, vector<1x256xf32> -> vector<2x256xf32>
    %55 = vector.extract_strided_slice %32 {offsets = [0, 64], sizes = [1, 64], strides = [1, 1]} : vector<16x128xf32> to vector<1x64xf32>
    %56 = vector.extract_strided_slice %32 {offsets = [1, 64], sizes = [1, 64], strides = [1, 1]} : vector<16x128xf32> to vector<1x64xf32>
    %57 = vector.extract_strided_slice %32 {offsets = [2, 64], sizes = [1, 64], strides = [1, 1]} : vector<16x128xf32> to vector<1x64xf32>
    %58 = vector.extract_strided_slice %32 {offsets = [3, 64], sizes = [1, 64], strides = [1, 1]} : vector<16x128xf32> to vector<1x64xf32>
    %59 = tpu.concatenate %55, %56, %57, %58 in 1 : vector<1x64xf32>, vector<1x64xf32>, vector<1x64xf32>, vector<1x64xf32> -> vector<1x256xf32>
    %60 = vector.extract_strided_slice %32 {offsets = [8, 64], sizes = [1, 64], strides = [1, 1]} : vector<16x128xf32> to vector<1x64xf32>
    %61 = vector.extract_strided_slice %32 {offsets = [9, 64], sizes = [1, 64], strides = [1, 1]} : vector<16x128xf32> to vector<1x64xf32>
    %62 = vector.extract_strided_slice %32 {offsets = [10, 64], sizes = [1, 64], strides = [1, 1]} : vector<16x128xf32> to vector<1x64xf32>
    %63 = vector.extract_strided_slice %32 {offsets = [11, 64], sizes = [1, 64], strides = [1, 1]} : vector<16x128xf32> to vector<1x64xf32>
    %64 = tpu.concatenate %60, %61, %62, %63 in 1 : vector<1x64xf32>, vector<1x64xf32>, vector<1x64xf32>, vector<1x64xf32> -> vector<1x256xf32>
    %65 = tpu.concatenate %59, %64 in 0 : vector<1x256xf32>, vector<1x256xf32> -> vector<2x256xf32>
    %66 = vector.extract_strided_slice %32 {offsets = [2, 0], sizes = [1, 64], strides = [1, 1]} : vector<16x128xf32> to vector<1x64xf32>
    %67 = vector.extract_strided_slice %32 {offsets = [3, 0], sizes = [1, 64], strides = [1, 1]} : vector<16x128xf32> to vector<1x64xf32>
    %68 = vector.extract_strided_slice %32 {offsets = [4, 0], sizes = [1, 64], strides = [1, 1]} : vector<16x128xf32> to vector<1x64xf32>
    %69 = vector.extract_strided_slice %32 {offsets = [5, 0], sizes = [1, 64], strides = [1, 1]} : vector<16x128xf32> to vector<1x64xf32>
    %70 = tpu.concatenate %66, %67, %68, %69 in 1 : vector<1x64xf32>, vector<1x64xf32>, vector<1x64xf32>, vector<1x64xf32> -> vector<1x256xf32>
    %71 = vector.extract_strided_slice %32 {offsets = [10, 0], sizes = [1, 64], strides = [1, 1]} : vector<16x128xf32> to vector<1x64xf32>
    %72 = vector.extract_strided_slice %32 {offsets = [11, 0], sizes = [1, 64], strides = [1, 1]} : vector<16x128xf32> to vector<1x64xf32>
    %73 = vector.extract_strided_slice %32 {offsets = [12, 0], sizes = [1, 64], strides = [1, 1]} : vector<16x128xf32> to vector<1x64xf32>
    %74 = vector.extract_strided_slice %32 {offsets = [13, 0], sizes = [1, 64], strides = [1, 1]} : vector<16x128xf32> to vector<1x64xf32>
    %75 = tpu.concatenate %71, %72, %73, %74 in 1 : vector<1x64xf32>, vector<1x64xf32>, vector<1x64xf32>, vector<1x64xf32> -> vector<1x256xf32>
    %76 = tpu.concatenate %70, %75 in 0 : vector<1x256xf32>, vector<1x256xf32> -> vector<2x256xf32>
    %77 = vector.extract_strided_slice %32 {offsets = [2, 32], sizes = [1, 64], strides = [1, 1]} : vector<16x128xf32> to vector<1x64xf32>
    %78 = vector.extract_strided_slice %32 {offsets = [3, 32], sizes = [1, 64], strides = [1, 1]} : vector<16x128xf32> to vector<1x64xf32>
    %79 = vector.extract_strided_slice %32 {offsets = [4, 32], sizes = [1, 64], strides = [1, 1]} : vector<16x128xf32> to vector<1x64xf32>
    %80 = vector.extract_strided_slice %32 {offsets = [5, 32], sizes = [1, 64], strides = [1, 1]} : vector<16x128xf32> to vector<1x64xf32>
    %81 = tpu.concatenate %77, %78, %79, %80 in 1 : vector<1x64xf32>, vector<1x64xf32>, vector<1x64xf32>, vector<1x64xf32> -> vector<1x256xf32>
    %82 = vector.extract_strided_slice %32 {offsets = [10, 32], sizes = [1, 64], strides = [1, 1]} : vector<16x128xf32> to vector<1x64xf32>
    %83 = vector.extract_strided_slice %32 {offsets = [11, 32], sizes = [1, 64], strides = [1, 1]} : vector<16x128xf32> to vector<1x64xf32>
    %84 = vector.extract_strided_slice %32 {offsets = [12, 32], sizes = [1, 64], strides = [1, 1]} : vector<16x128xf32> to vector<1x64xf32>
    %85 = vector.extract_strided_slice %32 {offsets = [13, 32], sizes = [1, 64], strides = [1, 1]} : vector<16x128xf32> to vector<1x64xf32>
    %86 = tpu.concatenate %82, %83, %84, %85 in 1 : vector<1x64xf32>, vector<1x64xf32>, vector<1x64xf32>, vector<1x64xf32> -> vector<1x256xf32>
    %87 = tpu.concatenate %81, %86 in 0 : vector<1x256xf32>, vector<1x256xf32> -> vector<2x256xf32>
    %88 = vector.extract_strided_slice %32 {offsets = [2, 64], sizes = [1, 64], strides = [1, 1]} : vector<16x128xf32> to vector<1x64xf32>
    %89 = vector.extract_strided_slice %32 {offsets = [3, 64], sizes = [1, 64], strides = [1, 1]} : vector<16x128xf32> to vector<1x64xf32>
    %90 = vector.extract_strided_slice %32 {offsets = [4, 64], sizes = [1, 64], strides = [1, 1]} : vector<16x128xf32> to vector<1x64xf32>
    %91 = vector.extract_strided_slice %32 {offsets = [5, 64], sizes = [1, 64], strides = [1, 1]} : vector<16x128xf32> to vector<1x64xf32>
    %92 = tpu.concatenate %88, %89, %90, %91 in 1 : vector<1x64xf32>, vector<1x64xf32>, vector<1x64xf32>, vector<1x64xf32> -> vector<1x256xf32>
    %93 = vector.extract_strided_slice %32 {offsets = [10, 64], sizes = [1, 64], strides = [1, 1]} : vector<16x128xf32> to vector<1x64xf32>
    %94 = vector.extract_strided_slice %32 {offsets = [11, 64], sizes = [1, 64], strides = [1, 1]} : vector<16x128xf32> to vector<1x64xf32>
    %95 = vector.extract_strided_slice %32 {offsets = [12, 64], sizes = [1, 64], strides = [1, 1]} : vector<16x128xf32> to vector<1x64xf32>
    %96 = vector.extract_strided_slice %32 {offsets = [13, 64], sizes = [1, 64], strides = [1, 1]} : vector<16x128xf32> to vector<1x64xf32>
    %97 = tpu.concatenate %93, %94, %95, %96 in 1 : vector<1x64xf32>, vector<1x64xf32>, vector<1x64xf32>, vector<1x64xf32> -> vector<1x256xf32>
    %98 = tpu.concatenate %92, %97 in 0 : vector<1x256xf32>, vector<1x256xf32> -> vector<2x256xf32>
    %99 = vector.extract_strided_slice %32 {offsets = [4, 0], sizes = [1, 64], strides = [1, 1]} : vector<16x128xf32> to vector<1x64xf32>
    %100 = vector.extract_strided_slice %32 {offsets = [5, 0], sizes = [1, 64], strides = [1, 1]} : vector<16x128xf32> to vector<1x64xf32>
    %101 = vector.extract_strided_slice %32 {offsets = [6, 0], sizes = [1, 64], strides = [1, 1]} : vector<16x128xf32> to vector<1x64xf32>
    %102 = vector.extract_strided_slice %32 {offsets = [7, 0], sizes = [1, 64], strides = [1, 1]} : vector<16x128xf32> to vector<1x64xf32>
    %103 = tpu.concatenate %99, %100, %101, %102 in 1 : vector<1x64xf32>, vector<1x64xf32>, vector<1x64xf32>, vector<1x64xf32> -> vector<1x256xf32>
    %104 = vector.extract_strided_slice %32 {offsets = [12, 0], sizes = [1, 64], strides = [1, 1]} : vector<16x128xf32> to vector<1x64xf32>
    %105 = vector.extract_strided_slice %32 {offsets = [13, 0], sizes = [1, 64], strides = [1, 1]} : vector<16x128xf32> to vector<1x64xf32>
    %106 = vector.extract_strided_slice %32 {offsets = [14, 0], sizes = [1, 64], strides = [1, 1]} : vector<16x128xf32> to vector<1x64xf32>
    %107 = vector.extract_strided_slice %32 {offsets = [15, 0], sizes = [1, 64], strides = [1, 1]} : vector<16x128xf32> to vector<1x64xf32>
    %108 = tpu.concatenate %104, %105, %106, %107 in 1 : vector<1x64xf32>, vector<1x64xf32>, vector<1x64xf32>, vector<1x64xf32> -> vector<1x256xf32>
    %109 = tpu.concatenate %103, %108 in 0 : vector<1x256xf32>, vector<1x256xf32> -> vector<2x256xf32>
    %110 = vector.extract_strided_slice %32 {offsets = [4, 32], sizes = [1, 64], strides = [1, 1]} : vector<16x128xf32> to vector<1x64xf32>
    %111 = vector.extract_strided_slice %32 {offsets = [5, 32], sizes = [1, 64], strides = [1, 1]} : vector<16x128xf32> to vector<1x64xf32>
    %112 = vector.extract_strided_slice %32 {offsets = [6, 32], sizes = [1, 64], strides = [1, 1]} : vector<16x128xf32> to vector<1x64xf32>
    %113 = vector.extract_strided_slice %32 {offsets = [7, 32], sizes = [1, 64], strides = [1, 1]} : vector<16x128xf32> to vector<1x64xf32>
    %114 = tpu.concatenate %110, %111, %112, %113 in 1 : vector<1x64xf32>, vector<1x64xf32>, vector<1x64xf32>, vector<1x64xf32> -> vector<1x256xf32>
    %115 = vector.extract_strided_slice %32 {offsets = [12, 32], sizes = [1, 64], strides = [1, 1]} : vector<16x128xf32> to vector<1x64xf32>
    %116 = vector.extract_strided_slice %32 {offsets = [13, 32], sizes = [1, 64], strides = [1, 1]} : vector<16x128xf32> to vector<1x64xf32>
    %117 = vector.extract_strided_slice %32 {offsets = [14, 32], sizes = [1, 64], strides = [1, 1]} : vector<16x128xf32> to vector<1x64xf32>
    %118 = vector.extract_strided_slice %32 {offsets = [15, 32], sizes = [1, 64], strides = [1, 1]} : vector<16x128xf32> to vector<1x64xf32>
    %119 = tpu.concatenate %115, %116, %117, %118 in 1 : vector<1x64xf32>, vector<1x64xf32>, vector<1x64xf32>, vector<1x64xf32> -> vector<1x256xf32>
    %120 = tpu.concatenate %114, %119 in 0 : vector<1x256xf32>, vector<1x256xf32> -> vector<2x256xf32>
    %121 = vector.extract_strided_slice %32 {offsets = [4, 64], sizes = [1, 64], strides = [1, 1]} : vector<16x128xf32> to vector<1x64xf32>
    %122 = vector.extract_strided_slice %32 {offsets = [5, 64], sizes = [1, 64], strides = [1, 1]} : vector<16x128xf32> to vector<1x64xf32>
    %123 = vector.extract_strided_slice %32 {offsets = [6, 64], sizes = [1, 64], strides = [1, 1]} : vector<16x128xf32> to vector<1x64xf32>
    %124 = vector.extract_strided_slice %32 {offsets = [7, 64], sizes = [1, 64], strides = [1, 1]} : vector<16x128xf32> to vector<1x64xf32>
    %125 = tpu.concatenate %121, %122, %123, %124 in 1 : vector<1x64xf32>, vector<1x64xf32>, vector<1x64xf32>, vector<1x64xf32> -> vector<1x256xf32>
    %126 = vector.extract_strided_slice %32 {offsets = [12, 64], sizes = [1, 64], strides = [1, 1]} : vector<16x128xf32> to vector<1x64xf32>
    %127 = vector.extract_strided_slice %32 {offsets = [13, 64], sizes = [1, 64], strides = [1, 1]} : vector<16x128xf32> to vector<1x64xf32>
    %128 = vector.extract_strided_slice %32 {offsets = [14, 64], sizes = [1, 64], strides = [1, 1]} : vector<16x128xf32> to vector<1x64xf32>
    %129 = vector.extract_strided_slice %32 {offsets = [15, 64], sizes = [1, 64], strides = [1, 1]} : vector<16x128xf32> to vector<1x64xf32>
    %130 = tpu.concatenate %126, %127, %128, %129 in 1 : vector<1x64xf32>, vector<1x64xf32>, vector<1x64xf32>, vector<1x64xf32> -> vector<1x256xf32>
    %131 = tpu.concatenate %125, %130 in 0 : vector<1x256xf32>, vector<1x256xf32> -> vector<2x256xf32>
    %132 = tpu.concatenate %43, %54, %65, %76, %87, %98, %109, %120, %131 in 0 : vector<2x256xf32>, vector<2x256xf32>, vector<2x256xf32>, vector<2x256xf32>, vector<2x256xf32>, vector<2x256xf32>, vector<2x256xf32>, vector<2x256xf32>, vector<2x256xf32> -> vector<18x256xf32>
    %c0_6 = arith.constant 0 : index
    %c0_7 = arith.constant 0 : index
    %133 = vector.load %arg3[%c0_6, %c0_7] : memref<256x32xf32, #tpu.memory_space<vmem>>, vector<256x32xf32>
    %cst_8 = arith.constant dense<0.000000e+00> : vector<18x32xf32>
    %134 = tpu.matmul %132, %133, %cst_8 {dimension_numbers = #tpu.dot_dimension_numbers<[1], [0], [0], [1], [0, 0, 1, 1], [], []>} : vector<18x256xf32>, vector<256x32xf32>, vector<18x32xf32> -> vector<18x32xf32>
    %c0_9 = arith.constant 0 : index
    %c0_10 = arith.constant 0 : index
    %135 = vector.load %arg4[%c0_9, %c0_10] : memref<1x32xf32, #tpu.memory_space<vmem>>, vector<1x32xf32>
    %136 = vector.broadcast %135 : vector<1x32xf32> to vector<18x32xf32>
    %137 = arith.addf %134, %136 : vector<18x32xf32>
    %cst_11 = arith.constant 0.000000e+00 : f32
    %138 = vector.broadcast %cst_11 : f32 to vector<18x32xf32>
    %139 = arith.maximumf %137, %138 : vector<18x32xf32>
    %140 = vector.extract_strided_slice %139 {offsets = [0, 0], sizes = [2, 32], strides = [1, 1]} : vector<18x32xf32> to vector<2x32xf32>
    %141 = vector.extract_strided_slice %139 {offsets = [2, 0], sizes = [2, 32], strides = [1, 1]} : vector<18x32xf32> to vector<2x32xf32>
    %142 = vector.extract_strided_slice %139 {offsets = [4, 0], sizes = [2, 32], strides = [1, 1]} : vector<18x32xf32> to vector<2x32xf32>
    %143 = vector.extract_strided_slice %139 {offsets = [6, 0], sizes = [2, 32], strides = [1, 1]} : vector<18x32xf32> to vector<2x32xf32>
    %144 = vector.extract_strided_slice %139 {offsets = [8, 0], sizes = [2, 32], strides = [1, 1]} : vector<18x32xf32> to vector<2x32xf32>
    %145 = vector.extract_strided_slice %139 {offsets = [10, 0], sizes = [2, 32], strides = [1, 1]} : vector<18x32xf32> to vector<2x32xf32>
    %146 = vector.extract_strided_slice %139 {offsets = [12, 0], sizes = [2, 32], strides = [1, 1]} : vector<18x32xf32> to vector<2x32xf32>
    %147 = vector.extract_strided_slice %139 {offsets = [14, 0], sizes = [2, 32], strides = [1, 1]} : vector<18x32xf32> to vector<2x32xf32>
    %148 = vector.extract_strided_slice %139 {offsets = [16, 0], sizes = [2, 32], strides = [1, 1]} : vector<18x32xf32> to vector<2x32xf32>
    %149 = tpu.concatenate %140, %141, %142, %143, %144, %145, %146, %147, %148 in 1 : vector<2x32xf32>, vector<2x32xf32>, vector<2x32xf32>, vector<2x32xf32>, vector<2x32xf32>, vector<2x32xf32>, vector<2x32xf32>, vector<2x32xf32>, vector<2x32xf32> -> vector<2x288xf32>
    %c0_12 = arith.constant 0 : index
    %c0_13 = arith.constant 0 : index
    %150 = vector.load %arg5[%c0_12, %c0_13] : memref<288x32xf32, #tpu.memory_space<vmem>>, vector<288x32xf32>
    %cst_14 = arith.constant dense<0.000000e+00> : vector<2x32xf32>
    %151 = tpu.matmul %149, %150, %cst_14 {dimension_numbers = #tpu.dot_dimension_numbers<[1], [0], [0], [1], [0, 0, 1, 1], [], []>} : vector<2x288xf32>, vector<288x32xf32>, vector<2x32xf32> -> vector<2x32xf32>
    %c0_15 = arith.constant 0 : index
    %c0_16 = arith.constant 0 : index
    %152 = vector.load %arg6[%c0_15, %c0_16] : memref<1x32xf32, #tpu.memory_space<vmem>>, vector<1x32xf32>
    %153 = vector.broadcast %152 : vector<1x32xf32> to vector<2x32xf32>
    %154 = arith.addf %151, %153 : vector<2x32xf32>
    %cst_17 = arith.constant 0.000000e+00 : f32
    %155 = vector.broadcast %cst_17 : f32 to vector<2x32xf32>
    %156 = arith.maximumf %154, %155 : vector<2x32xf32>
    %c0_18 = arith.constant 0 : index
    %c0_19 = arith.constant 0 : index
    %157 = vector.load %arg7[%c0_18, %c0_19] : memref<32x64xf32, #tpu.memory_space<vmem>>, vector<32x64xf32>
    %cst_20 = arith.constant dense<0.000000e+00> : vector<2x64xf32>
    %158 = tpu.matmul %156, %157, %cst_20 {dimension_numbers = #tpu.dot_dimension_numbers<[1], [0], [0], [1], [0, 0, 1, 1], [], []>} : vector<2x32xf32>, vector<32x64xf32>, vector<2x64xf32> -> vector<2x64xf32>
    %c0_21 = arith.constant 0 : index
    %c0_22 = arith.constant 0 : index
    %159 = vector.load %arg8[%c0_21, %c0_22] : memref<1x64xf32, #tpu.memory_space<vmem>>, vector<1x64xf32>
    %160 = vector.broadcast %159 : vector<1x64xf32> to vector<2x64xf32>
    %161 = arith.addf %158, %160 : vector<2x64xf32>
    %cst_23 = arith.constant 0.000000e+00 : f32
    %162 = vector.broadcast %cst_23 : f32 to vector<2x64xf32>
    %163 = arith.maximumf %161, %162 : vector<2x64xf32>
    %c0_24 = arith.constant 0 : index
    %c0_25 = arith.constant 0 : index
    %164 = vector.load %arg9[%c0_24, %c0_25] : memref<64x40xf32, #tpu.memory_space<vmem>>, vector<64x40xf32>
    %cst_26 = arith.constant dense<0.000000e+00> : vector<2x40xf32>
    %165 = tpu.matmul %163, %164, %cst_26 {dimension_numbers = #tpu.dot_dimension_numbers<[1], [0], [0], [1], [0, 0, 1, 1], [], []>} : vector<2x64xf32>, vector<64x40xf32>, vector<2x40xf32> -> vector<2x40xf32>
    %c0_27 = arith.constant 0 : index
    %c0_28 = arith.constant 0 : index
    %166 = vector.load %arg10[%c0_27, %c0_28] : memref<1x40xf32, #tpu.memory_space<vmem>>, vector<1x40xf32>
    %167 = vector.broadcast %166 : vector<1x40xf32> to vector<2x40xf32>
    %168 = arith.addf %165, %167 : vector<2x40xf32>
    %169 = vector.extract_strided_slice %168 {offsets = [0, 0], sizes = [2, 32], strides = [1, 1]} : vector<2x40xf32> to vector<2x32xf32>
    %170 = vector.extract_strided_slice %168 {offsets = [0, 32], sizes = [2, 8], strides = [1, 1]} : vector<2x40xf32> to vector<2x8xf32>
    %171 = vector.extract_strided_slice %169 {offsets = [0, 0], sizes = [2, 8], strides = [1, 1]} : vector<2x32xf32> to vector<2x8xf32>
    %172 = vector.extract_strided_slice %169 {offsets = [0, 8], sizes = [2, 8], strides = [1, 1]} : vector<2x32xf32> to vector<2x8xf32>
    %173 = arith.addf %171, %172 : vector<2x8xf32>
    %174 = vector.extract_strided_slice %169 {offsets = [0, 16], sizes = [2, 8], strides = [1, 1]} : vector<2x32xf32> to vector<2x8xf32>
    %175 = arith.addf %173, %174 : vector<2x8xf32>
    %176 = vector.extract_strided_slice %169 {offsets = [0, 24], sizes = [2, 8], strides = [1, 1]} : vector<2x32xf32> to vector<2x8xf32>
    %177 = arith.addf %175, %176 : vector<2x8xf32>
    %cst_29 = arith.constant 2.500000e-01 : f32
    %178 = vector.broadcast %cst_29 : f32 to vector<2x8xf32>
    %179 = arith.mulf %177, %178 : vector<2x8xf32>
    %180 = arith.subf %170, %179 : vector<2x8xf32>
    %181 = tpu.concatenate %180, %180, %180, %180 in 1 : vector<2x8xf32>, vector<2x8xf32>, vector<2x8xf32>, vector<2x8xf32> -> vector<2x32xf32>
    %182 = arith.addf %169, %181 : vector<2x32xf32>
    %183 = vector.extract_strided_slice %182 {offsets = [0, 0], sizes = [2, 8], strides = [1, 1]} : vector<2x32xf32> to vector<2x8xf32>
    %cst_30 = arith.constant dense<0xFF800000> : vector<2xf32>
    %184 = vector.multi_reduction <maximumf>, %183, %cst_30 [1] : vector<2x8xf32> to vector<2xf32>
    %185 = vector.shape_cast %184 : vector<2xf32> to vector<2x1xf32>
    %186 = vector.extract_strided_slice %182 {offsets = [0, 8], sizes = [2, 8], strides = [1, 1]} : vector<2x32xf32> to vector<2x8xf32>
    %cst_31 = arith.constant dense<0xFF800000> : vector<2xf32>
    %187 = vector.multi_reduction <maximumf>, %186, %cst_31 [1] : vector<2x8xf32> to vector<2xf32>
    %188 = vector.shape_cast %187 : vector<2xf32> to vector<2x1xf32>
    %189 = vector.extract_strided_slice %182 {offsets = [0, 16], sizes = [2, 8], strides = [1, 1]} : vector<2x32xf32> to vector<2x8xf32>
    %cst_32 = arith.constant dense<0xFF800000> : vector<2xf32>
    %190 = vector.multi_reduction <maximumf>, %189, %cst_32 [1] : vector<2x8xf32> to vector<2xf32>
    %191 = vector.shape_cast %190 : vector<2xf32> to vector<2x1xf32>
    %192 = vector.extract_strided_slice %182 {offsets = [0, 24], sizes = [2, 8], strides = [1, 1]} : vector<2x32xf32> to vector<2x8xf32>
    %cst_33 = arith.constant dense<0xFF800000> : vector<2xf32>
    %193 = vector.multi_reduction <maximumf>, %192, %cst_33 [1] : vector<2x8xf32> to vector<2xf32>
    %194 = vector.shape_cast %193 : vector<2xf32> to vector<2x1xf32>
    %195 = vector.shape_cast %185 : vector<2x1xf32> to vector<2x1xf32>
    %196 = vector.broadcast %195 : vector<2x1xf32> to vector<2x8xf32>
    %197 = vector.shape_cast %188 : vector<2x1xf32> to vector<2x1xf32>
    %198 = vector.broadcast %197 : vector<2x1xf32> to vector<2x8xf32>
    %199 = vector.shape_cast %191 : vector<2x1xf32> to vector<2x1xf32>
    %200 = vector.broadcast %199 : vector<2x1xf32> to vector<2x8xf32>
    %201 = vector.shape_cast %194 : vector<2x1xf32> to vector<2x1xf32>
    %202 = vector.broadcast %201 : vector<2x1xf32> to vector<2x8xf32>
    %203 = tpu.concatenate %196, %198, %200, %202 in 1 : vector<2x8xf32>, vector<2x8xf32>, vector<2x8xf32>, vector<2x8xf32> -> vector<2x32xf32>
    %204 = arith.subf %182, %203 : vector<2x32xf32>
    %205 = math.exp %204 : vector<2x32xf32>
    %c0_34 = arith.constant 0 : index
    %c0_35 = arith.constant 0 : index
    %206 = vector.load %arg11[%c0_34, %c0_35] : memref<1x8xf32, #tpu.memory_space<vmem>>, vector<1x8xf32>
    %207 = vector.extract_strided_slice %205 {offsets = [0, 0], sizes = [2, 8], strides = [1, 1]} : vector<2x32xf32> to vector<2x8xf32>
    %cst_36 = arith.constant dense<0.000000e+00> : vector<2xf32>
    %208 = vector.multi_reduction <add>, %207, %cst_36 [1] : vector<2x8xf32> to vector<2xf32>
    %209 = vector.shape_cast %208 : vector<2xf32> to vector<2x1xf32>
    %210 = tpu.reciprocal %209 {approx = true} : vector<2x1xf32> -> vector<2x1xf32>
    %211 = vector.broadcast %210 : vector<2x1xf32> to vector<2x8xf32>
    %212 = arith.mulf %207, %211 : vector<2x8xf32>
    %cst_37 = arith.constant 1.000000e-03 : f32
    %213 = vector.broadcast %cst_37 : f32 to vector<2x8xf32>
    %214 = arith.maximumf %212, %213 : vector<2x8xf32>
    %215 = vector.broadcast %206 : vector<1x8xf32> to vector<2x8xf32>
    %216 = arith.mulf %214, %215 : vector<2x8xf32>
    %cst_38 = arith.constant dense<0.000000e+00> : vector<2xf32>
    %217 = vector.multi_reduction <add>, %216, %cst_38 [1] : vector<2x8xf32> to vector<2xf32>
    %218 = vector.shape_cast %217 : vector<2xf32> to vector<2x1xf32>
    %219 = vector.extract_strided_slice %205 {offsets = [0, 8], sizes = [2, 8], strides = [1, 1]} : vector<2x32xf32> to vector<2x8xf32>
    %cst_39 = arith.constant dense<0.000000e+00> : vector<2xf32>
    %220 = vector.multi_reduction <add>, %219, %cst_39 [1] : vector<2x8xf32> to vector<2xf32>
    %221 = vector.shape_cast %220 : vector<2xf32> to vector<2x1xf32>
    %222 = tpu.reciprocal %221 {approx = true} : vector<2x1xf32> -> vector<2x1xf32>
    %223 = vector.broadcast %222 : vector<2x1xf32> to vector<2x8xf32>
    %224 = arith.mulf %219, %223 : vector<2x8xf32>
    %cst_40 = arith.constant 1.000000e-03 : f32
    %225 = vector.broadcast %cst_40 : f32 to vector<2x8xf32>
    %226 = arith.maximumf %224, %225 : vector<2x8xf32>
    %227 = vector.broadcast %206 : vector<1x8xf32> to vector<2x8xf32>
    %228 = arith.mulf %226, %227 : vector<2x8xf32>
    %cst_41 = arith.constant dense<0.000000e+00> : vector<2xf32>
    %229 = vector.multi_reduction <add>, %228, %cst_41 [1] : vector<2x8xf32> to vector<2xf32>
    %230 = vector.shape_cast %229 : vector<2xf32> to vector<2x1xf32>
    %231 = vector.extract_strided_slice %205 {offsets = [0, 16], sizes = [2, 8], strides = [1, 1]} : vector<2x32xf32> to vector<2x8xf32>
    %cst_42 = arith.constant dense<0.000000e+00> : vector<2xf32>
    %232 = vector.multi_reduction <add>, %231, %cst_42 [1] : vector<2x8xf32> to vector<2xf32>
    %233 = vector.shape_cast %232 : vector<2xf32> to vector<2x1xf32>
    %234 = tpu.reciprocal %233 {approx = true} : vector<2x1xf32> -> vector<2x1xf32>
    %235 = vector.broadcast %234 : vector<2x1xf32> to vector<2x8xf32>
    %236 = arith.mulf %231, %235 : vector<2x8xf32>
    %cst_43 = arith.constant 1.000000e-03 : f32
    %237 = vector.broadcast %cst_43 : f32 to vector<2x8xf32>
    %238 = arith.maximumf %236, %237 : vector<2x8xf32>
    %239 = vector.broadcast %206 : vector<1x8xf32> to vector<2x8xf32>
    %240 = arith.mulf %238, %239 : vector<2x8xf32>
    %cst_44 = arith.constant dense<0.000000e+00> : vector<2xf32>
    %241 = vector.multi_reduction <add>, %240, %cst_44 [1] : vector<2x8xf32> to vector<2xf32>
    %242 = vector.shape_cast %241 : vector<2xf32> to vector<2x1xf32>
    %243 = vector.extract_strided_slice %205 {offsets = [0, 24], sizes = [2, 8], strides = [1, 1]} : vector<2x32xf32> to vector<2x8xf32>
    %cst_45 = arith.constant dense<0.000000e+00> : vector<2xf32>
    %244 = vector.multi_reduction <add>, %243, %cst_45 [1] : vector<2x8xf32> to vector<2xf32>
    %245 = vector.shape_cast %244 : vector<2xf32> to vector<2x1xf32>
    %246 = tpu.reciprocal %245 {approx = true} : vector<2x1xf32> -> vector<2x1xf32>
    %247 = vector.broadcast %246 : vector<2x1xf32> to vector<2x8xf32>
    %248 = arith.mulf %243, %247 : vector<2x8xf32>
    %cst_46 = arith.constant 1.000000e-03 : f32
    %249 = vector.broadcast %cst_46 : f32 to vector<2x8xf32>
    %250 = arith.maximumf %248, %249 : vector<2x8xf32>
    %251 = vector.broadcast %206 : vector<1x8xf32> to vector<2x8xf32>
    %252 = arith.mulf %250, %251 : vector<2x8xf32>
    %cst_47 = arith.constant dense<0.000000e+00> : vector<2xf32>
    %253 = vector.multi_reduction <add>, %252, %cst_47 [1] : vector<2x8xf32> to vector<2xf32>
    %254 = vector.shape_cast %253 : vector<2xf32> to vector<2x1xf32>
    %255 = tpu.concatenate %218, %230, %242, %254 in 1 : vector<2x1xf32>, vector<2x1xf32>, vector<2x1xf32>, vector<2x1xf32> -> vector<2x4xf32>
    %c0_48 = arith.constant 0 : index
    %c0_49 = arith.constant 0 : index
    %256 = vector.load %arg12[%c0_48, %c0_49] : memref<2x4xf32, #tpu.memory_space<vmem>>, vector<2x4xf32>
    tpu.vector_store %arg12[%c0_48, %c0_49], %255 {strides = array<i32>} : memref<2x4xf32, #tpu.memory_space<vmem>>, vector<2x4xf32>,
    return
  }
}

</mosaic_0001>

<llo_original>
// kernel: convnet_forward.1
$region0: #{convnet_forward.1}
  #allocation0 [shape = 'u32[]', space=smem, size = 0x4, offset = 0x4, fixed_abs, tag = 'smem constant byte address 0x4 - core index']
  #allocation1 [shape = 'u32[72,128]{1,0:T(1,128)}', space=vmem, size = 0x9000, scoped, tag = 'internal scratch']
  %s0 = inlined_call_operand.vmem [shape: f32[128,256], index: 0, kind: input, shape index: {}]
  %s1 = inlined_call_operand.vmem [shape: f32[256,16], index: 1, kind: input, shape index: {}]
  %s2 = inlined_call_operand.vmem [shape: f32[1,16], index: 2, kind: input, shape index: {}]
  %s3 = inlined_call_operand.vmem [shape: f32[256,32], index: 3, kind: input, shape index: {}]
  %s4 = inlined_call_operand.vmem [shape: f32[1,32], index: 4, kind: input, shape index: {}]
  %s5 = inlined_call_operand.vmem [shape: f32[288,32], index: 5, kind: input, shape index: {}]
  %s6 = inlined_call_operand.vmem [shape: f32[1,32], index: 6, kind: input, shape index: {}]
  %s7 = inlined_call_operand.vmem [shape: f32[32,64], index: 7, kind: input, shape index: {}]
  %s8 = inlined_call_operand.vmem [shape: f32[1,64], index: 8, kind: input, shape index: {}]
  %s9 = inlined_call_operand.vmem [shape: f32[64,40], index: 9, kind: input, shape index: {}]
  %s10 = inlined_call_operand.vmem [shape: f32[1,40], index: 10, kind: input, shape index: {}]
  %s11 = inlined_call_operand.vmem [shape: f32[1,8], index: 11, kind: input, shape index: {}]
  %s12 = inlined_call_operand.hbm [shape: f32[2,4], index: 12, kind: output, shape index: {}]
  %s13 = sld [smem:[#allocation0]]
  $region58: #{convnet_forward.1} parent=0
    _
  %s15 = ssub.s32 1, %s13
  %s16 = scalar_select 0, %s15, %s13
  $region1: #{convnet_forward.1} parent=0
    #allocation2 [shape = 'u8[1024]{0}', space=vmem, size = 0x400, scoped, tag = 'output window, operand 0, single buffered']
    #allocation3 [shape = 's32[1]{0}', space=sflag, size = 0x4, scoped, tag = 'scoped memory for convnet_forward.1']
    %17 = vsyncpa [#allocation3], 0
    // Predicated region
    $region2: #{convnet_forward.1} parent=1 // pred_check
      _
    $region3: #{convnet_forward.1} parent=1 // pred_check_branch
      %19 = sbr.rel (0) target = $region5
    $region4: #{convnet_forward.1} parent=1 // pred_region
      _
    $region5: #{convnet_forward.1} parent=1 // pred_fallthru
      _
    // Predicated region
    $region6: #{convnet_forward.1} parent=1 // pred_check
      _
    $region7: #{convnet_forward.1} parent=1 // pred_check_branch
      %21 = sbr.rel (0) target = $region9
    $region8: #{convnet_forward.1} parent=1 // pred_region
      _
    $region9: #{convnet_forward.1} parent=1 // pred_fallthru
      _
    // Predicated region
    $region10: #{convnet_forward.1} parent=1 // pred_check
      _
    $region11: #{convnet_forward.1} parent=1 // pred_check_branch
      %23 = sbr.rel (0) target = $region13
    $region12: #{convnet_forward.1} parent=1 // pred_region
      _
    $region13: #{convnet_forward.1} parent=1 // pred_fallthru
      _
    // Predicated region
    $region14: #{convnet_forward.1} parent=1 // pred_check
      _
    $region15: #{convnet_forward.1} parent=1 // pred_check_branch
      %25 = sbr.rel (0) target = $region17
    $region16: #{convnet_forward.1} parent=1 // pred_region
      _
    $region17: #{convnet_forward.1} parent=1 // pred_fallthru
      _
    // Predicated region
    $region18: #{convnet_forward.1} parent=1 // pred_check
      _
    $region19: #{convnet_forward.1} parent=1 // pred_check_branch
      %27 = sbr.rel (0) target = $region21
    $region20: #{convnet_forward.1} parent=1 // pred_region
      _
    $region21: #{convnet_forward.1} parent=1 // pred_fallthru
      _
    // Predicated region
    $region22: #{convnet_forward.1} parent=1 // pred_check
      _
    $region23: #{convnet_forward.1} parent=1 // pred_check_branch
      %29 = sbr.rel (0) target = $region25
    $region24: #{convnet_forward.1} parent=1 // pred_region
      _
    $region25: #{convnet_forward.1} parent=1 // pred_fallthru
      _
    // Predicated region
    $region26: #{convnet_forward.1} parent=1 // pred_check
      _
    $region27: #{convnet_forward.1} parent=1 // pred_check_branch
      %31 = sbr.rel (0) target = $region29
    $region28: #{convnet_forward.1} parent=1 // pred_region
      _
    $region29: #{convnet_forward.1} parent=1 // pred_fallthru
      _
    // Predicated region
    $region30: #{convnet_forward.1} parent=1 // pred_check
      _
    $region31: #{convnet_forward.1} parent=1 // pred_check_branch
      %33 = sbr.rel (0) target = $region33
    $region32: #{convnet_forward.1} parent=1 // pred_region
      _
    $region33: #{convnet_forward.1} parent=1 // pred_fallthru
      _
    // Predicated region
    $region34: #{convnet_forward.1} parent=1 // pred_check
      _
    $region35: #{convnet_forward.1} parent=1 // pred_check_branch
      %35 = sbr.rel (0) target = $region37
    $region36: #{convnet_forward.1} parent=1 // pred_region
      _
    $region37: #{convnet_forward.1} parent=1 // pred_fallthru
      _
    // Predicated region
    $region38: #{convnet_forward.1} parent=1 // pred_check
      _
    $region39: #{convnet_forward.1} parent=1 // pred_check_branch
      %37 = sbr.rel (0) target = $region41
    $region40: #{convnet_forward.1} parent=1 // pred_region
      _
    $region41: #{convnet_forward.1} parent=1 // pred_fallthru
      _
    // Predicated region
    $region42: #{convnet_forward.1} parent=1 // pred_check
      _
    $region43: #{convnet_forward.1} parent=1 // pred_check_branch
      %39 = sbr.rel (0) target = $region45
    $region44: #{convnet_forward.1} parent=1 // pred_region
      _
    $region45: #{convnet_forward.1} parent=1 // pred_fallthru
      _
    // Predicated region
    $region46: #{convnet_forward.1} parent=1 // pred_check
      _
    $region47: #{convnet_forward.1} parent=1 // pred_check_branch
      %41 = sbr.rel (0) target = $region49
    $region48: #{convnet_forward.1} parent=1 // pred_region
      _
    $region49: #{convnet_forward.1} parent=1 // pred_fallthru
      _
    %v42 = vld [vmem:[%s0] sm:$0xff]
    %v43 = vld [vmem:[%s0 + $0x8] sm:$0xff]
    %v44 = vld [vmem:[%s0 + $0x10] sm:$0xff]
    %v45 = vld [vmem:[%s0 + $0x18] sm:$0xff]
    %v46 = vld [vmem:[%s0 + $0x20] sm:$0xff]
    %v47 = vld [vmem:[%s0 + $0x28] sm:$0xff]
    %v48 = vld [vmem:[%s0 + $0x30] sm:$0xff]
    %v49 = vld [vmem:[%s0 + $0x38] sm:$0xff]
    %v50 = vld [vmem:[%s0 + $0x40] sm:$0xff]
    %v51 = vld [vmem:[%s0 + $0x48] sm:$0xff]
    %v52 = vld [vmem:[%s0 + $0x50] sm:$0xff]
    %v53 = vld [vmem:[%s0 + $0x58] sm:$0xff]
    %v54 = vld [vmem:[%s0 + $0x60] sm:$0xff]
    %v55 = vld [vmem:[%s0 + $0x68] sm:$0xff]
    %v56 = vld [vmem:[%s0 + $0x70] sm:$0xff]
    %v57 = vld [vmem:[%s0 + $0x78] sm:$0xff]
    %v58 = vld [vmem:[%s0 + $0x80] sm:$0xff]
    %v59 = vld [vmem:[%s0 + $0x88] sm:$0xff]
    %v60 = vld [vmem:[%s0 + $0x90] sm:$0xff]
    %v61 = vld [vmem:[%s0 + $0x98] sm:$0xff]
    %v62 = vld [vmem:[%s0 + $0xa0] sm:$0xff]
    %v63 = vld [vmem:[%s0 + $0xa8] sm:$0xff]
    %v64 = vld [vmem:[%s0 + $0xb0] sm:$0xff]
    %v65 = vld [vmem:[%s0 + $0xb8] sm:$0xff]
    %v66 = vld [vmem:[%s0 + $0xc0] sm:$0xff]
    %v67 = vld [vmem:[%s0 + $0xc8] sm:$0xff]
    %v68 = vld [vmem:[%s0 + $0xd0] sm:$0xff]
    %v69 = vld [vmem:[%s0 + $0xd8] sm:$0xff]
    %v70 = vld [vmem:[%s0 + $0xe0] sm:$0xff]
    %v71 = vld [vmem:[%s0 + $0xe8] sm:$0xff]
    %v72 = vld [vmem:[%s0 + $0xf0] sm:$0xff]
    %v73 = vld [vmem:[%s0 + $0xf8] sm:$0xff]
    %v74 = vld [vmem:[%s1] sm:$0xff]
    %v75 = vld [vmem:[%s1 + $0x8] sm:$0xff]
    %v76 = vld [vmem:[%s1 + $0x10] sm:$0xff]
    %v77 = vld [vmem:[%s1 + $0x18] sm:$0xff]
    %v78 = vld [vmem:[%s1 + $0x20] sm:$0xff]
    %v79 = vld [vmem:[%s1 + $0x28] sm:$0xff]
    %v80 = vld [vmem:[%s1 + $0x30] sm:$0xff]
    %v81 = vld [vmem:[%s1 + $0x38] sm:$0xff]
    %v82 = vld [vmem:[%s1 + $0x40] sm:$0xff]
    %v83 = vld [vmem:[%s1 + $0x48] sm:$0xff]
    %v84 = vld [vmem:[%s1 + $0x50] sm:$0xff]
    %v85 = vld [vmem:[%s1 + $0x58] sm:$0xff]
    %v86 = vld [vmem:[%s1 + $0x60] sm:$0xff]
    %v87 = vld [vmem:[%s1 + $0x68] sm:$0xff]
    %v88 = vld [vmem:[%s1 + $0x70] sm:$0xff]
    %v89 = vld [vmem:[%s1 + $0x78] sm:$0xff]
    %v90 = vld [vmem:[%s1 + $0x80] sm:$0xff]
    %v91 = vld [vmem:[%s1 + $0x88] sm:$0xff]
    %v92 = vld [vmem:[%s1 + $0x90] sm:$0xff]
    %v93 = vld [vmem:[%s1 + $0x98] sm:$0xff]
    %v94 = vld [vmem:[%s1 + $0xa0] sm:$0xff]
    %v95 = vld [vmem:[%s1 + $0xa8] sm:$0xff]
    %v96 = vld [vmem:[%s1 + $0xb0] sm:$0xff]
    %v97 = vld [vmem:[%s1 + $0xb8] sm:$0xff]
    %v98 = vld [vmem:[%s1 + $0xc0] sm:$0xff]
    %v99 = vld [vmem:[%s1 + $0xc8] sm:$0xff]
    %v100 = vld [vmem:[%s1 + $0xd0] sm:$0xff]
    %v101 = vld [vmem:[%s1 + $0xd8] sm:$0xff]
    %v102 = vld [vmem:[%s1 + $0xe0] sm:$0xff]
    %v103 = vld [vmem:[%s1 + $0xe8] sm:$0xff]
    %v104 = vld [vmem:[%s1 + $0xf0] sm:$0xff]
    %v105 = vld [vmem:[%s1 + $0xf8] sm:$0xff]
    %v106 = vld [vmem:[%s2] sm:$0x1]
    %v108 = vperm.slane %v106, 0
    %110 = vmatpush.msra.mxu0 %v89
    %111 = vmatpush.msra.mxu0 %v88
    %112 = vmatpush.msra.mxu0 %v87
    %113 = vmatpush.msra.mxu0 %v86
    %114 = vmatpush.msra.mxu0 %v85
    %115 = vmatpush.msra.mxu0 %v84
    %116 = vmatpush.msra.mxu0 %v83
    %117 = vmatpush.msra.mxu0 %v82
    %118 = vmatpush.msra.mxu0 %v81
    %119 = vmatpush.msra.mxu0 %v80
    %120 = vmatpush.msra.mxu0 %v79
    %121 = vmatpush.msra.mxu0 %v78
    %122 = vmatpush.msra.mxu0 %v77
    %123 = vmatpush.msra.mxu0 %v76
    %124 = vmatpush.msra.mxu0 %v75
    %125 = vmatpush.msra.mxu0 %v74
    %126 = vmatmul.f32.gmra.mxu0 %v42
    %v127 = vpop.f32.mrf.mxu0
    %v128 = vadd.f32 %v108, %v127
    %129 = vmatmul.f32.gmra.mxu0 %v44
    %v130 = vpop.f32.mrf.mxu0
    %v131 = vadd.f32 %v108, %v130
    %132 = vmatmul.f32.gmra.mxu0 %v46
    %v133 = vpop.f32.mrf.mxu0
    %v134 = vadd.f32 %v108, %v133
    %135 = vmatmul.f32.gmra.mxu0 %v48
    %v136 = vpop.f32.mrf.mxu0
    %v137 = vadd.f32 %v108, %v136
    %138 = vmatmul.f32.gmra.mxu0 %v50
    %v139 = vpop.f32.mrf.mxu0
    %v140 = vadd.f32 %v108, %v139
    %141 = vmatmul.f32.gmra.mxu0 %v52
    %v142 = vpop.f32.mrf.mxu0
    %v143 = vadd.f32 %v108, %v142
    %144 = vmatmul.f32.gmra.mxu0 %v54
    %v145 = vpop.f32.mrf.mxu0
    %v146 = vadd.f32 %v108, %v145
    %147 = vmatmul.f32.gmra.mxu0 %v56
    %v148 = vpop.f32.mrf.mxu0
    %v149 = vadd.f32 %v108, %v148
    %150 = vmatmul.f32.gmra.mxu0 %v58
    %v151 = vpop.f32.mrf.mxu0
    %v152 = vadd.f32 %v108, %v151
    %153 = vmatmul.f32.gmra.mxu0 %v60
    %v154 = vpop.f32.mrf.mxu0
    %v155 = vadd.f32 %v108, %v154
    %156 = vmatmul.f32.gmra.mxu0 %v62
    %v157 = vpop.f32.mrf.mxu0
    %v158 = vadd.f32 %v108, %v157
    %159 = vmatmul.f32.gmra.mxu0 %v64
    %v160 = vpop.f32.mrf.mxu0
    %v161 = vadd.f32 %v108, %v160
    %162 = vmatmul.f32.gmra.mxu0 %v66
    %v163 = vpop.f32.mrf.mxu0
    %v164 = vadd.f32 %v108, %v163
    %165 = vmatmul.f32.gmra.mxu0 %v68
    %v166 = vpop.f32.mrf.mxu0
    %v167 = vadd.f32 %v108, %v166
    %168 = vmatmul.f32.gmra.mxu0 %v70
    %v169 = vpop.f32.mrf.mxu0
    %v170 = vadd.f32 %v108, %v169
    %171 = vmatmul.f32.gmra.mxu0 %v72
    %v172 = vpop.f32.mrf.mxu0
    %v173 = vadd.f32 %v108, %v172
    %174 = vdwg.mxu0
    %175 = vmatpush.msra.mxu0 %v105
    %176 = vmatpush.msra.mxu0 %v104
    %177 = vmatpush.msra.mxu0 %v103
    %178 = vmatpush.msra.mxu0 %v102
    %179 = vmatpush.msra.mxu0 %v101
    %180 = vmatpush.msra.mxu0 %v100
    %181 = vmatpush.msra.mxu0 %v99
    %182 = vmatpush.msra.mxu0 %v98
    %183 = vmatpush.msra.mxu0 %v97
    %184 = vmatpush.msra.mxu0 %v96
    %185 = vmatpush.msra.mxu0 %v95
    %186 = vmatpush.msra.mxu0 %v94
    %187 = vmatpush.msra.mxu0 %v93
    %188 = vmatpush.msra.mxu0 %v92
    %189 = vmatpush.msra.mxu0 %v91
    %190 = vmatpush.msra.mxu0 %v90
    %191 = vmatmul.f32.gmra.mxu0 %v43
    %v192 = vpop.f32.mrf.mxu0
    %v193 = vadd.f32 %v128, %v192
    %194 = vmatmul.f32.gmra.mxu0 %v45
    %v195 = vpop.f32.mrf.mxu0
    %v196 = vadd.f32 %v131, %v195
    %197 = vmatmul.f32.gmra.mxu0 %v47
    %v198 = vpop.f32.mrf.mxu0
    %v199 = vadd.f32 %v134, %v198
    %200 = vmatmul.f32.gmra.mxu0 %v49
    %v201 = vpop.f32.mrf.mxu0
    %v202 = vadd.f32 %v137, %v201
    %203 = vmatmul.f32.gmra.mxu0 %v51
    %v204 = vpop.f32.mrf.mxu0
    %v205 = vadd.f32 %v140, %v204
    %206 = vmatmul.f32.gmra.mxu0 %v53
    %v207 = vpop.f32.mrf.mxu0
    %v208 = vadd.f32 %v143, %v207
    %209 = vmatmul.f32.gmra.mxu0 %v55
    %v210 = vpop.f32.mrf.mxu0
    %v211 = vadd.f32 %v146, %v210
    %212 = vmatmul.f32.gmra.mxu0 %v57
    %v213 = vpop.f32.mrf.mxu0
    %v214 = vadd.f32 %v149, %v213
    %215 = vmatmul.f32.gmra.mxu0 %v59
    %v216 = vpop.f32.mrf.mxu0
    %v217 = vadd.f32 %v152, %v216
    %218 = vmatmul.f32.gmra.mxu0 %v61
    %v219 = vpop.f32.mrf.mxu0
    %v220 = vadd.f32 %v155, %v219
    %221 = vmatmul.f32.gmra.mxu0 %v63
    %v222 = vpop.f32.mrf.mxu0
    %v223 = vadd.f32 %v158, %v222
    %224 = vmatmul.f32.gmra.mxu0 %v65
    %v225 = vpop.f32.mrf.mxu0
    %v226 = vadd.f32 %v161, %v225
    %227 = vmatmul.f32.gmra.mxu0 %v67
    %v228 = vpop.f32.mrf.mxu0
    %v229 = vadd.f32 %v164, %v228
    %230 = vmatmul.f32.gmra.mxu0 %v69
    %v231 = vpop.f32.mrf.mxu0
    %v232 = vadd.f32 %v167, %v231
    %233 = vmatmul.f32.gmra.mxu0 %v71
    %v234 = vpop.f32.mrf.mxu0
    %v235 = vadd.f32 %v170, %v234
    %236 = vmatmul.f32.gmra.mxu0 %v73
    %v237 = vpop.f32.mrf.mxu0
    %v238 = vadd.f32 %v173, %v237
    %239 = vdwg.mxu0
    %v240 = vmax.f32 %v193, 0.0
    %v241 = vmax.f32 %v196, 0.0
    %v242 = vmax.f32 %v199, 0.0
    %v243 = vmax.f32 %v202, 0.0
    %v244 = vmax.f32 %v205, 0.0
    %v245 = vmax.f32 %v208, 0.0
    %v246 = vmax.f32 %v211, 0.0
    %v247 = vmax.f32 %v214, 0.0
    %v248 = vmax.f32 %v217, 0.0
    %v249 = vmax.f32 %v220, 0.0
    %v250 = vmax.f32 %v223, 0.0
    %v251 = vmax.f32 %v226, 0.0
    %v252 = vmax.f32 %v229, 0.0
    %v253 = vmax.f32 %v232, 0.0
    %v254 = vmax.f32 %v235, 0.0
    %v255 = vmax.f32 %v238, 0.0
    %258 = vrot.lane.b32.xlu0 %v241, 16
    %v259 = vpop.permute.xlu0 %258
    %260 = vrot.lane.b32.xlu0 %v249, 16
    %v261 = vpop.permute.xlu0 %260
    %266 = vrot.lane.b32.xlu0 %v242, 32
    %v267 = vpop.permute.xlu0 %266
    %268 = vrot.lane.b32.xlu0 %v250, 32
    %v269 = vpop.permute.xlu0 %268
    %274 = vrot.lane.b32.xlu0 %v243, 48
    %v275 = vpop.permute.xlu0 %274
    %276 = vrot.lane.b32.xlu0 %v251, 48
    %v277 = vpop.permute.xlu0 %276
    %282 = vrot.lane.b32.xlu0 %v244, 64
    %v283 = vpop.permute.xlu0 %282
    %284 = vrot.lane.b32.xlu0 %v252, 64
    %v285 = vpop.permute.xlu0 %284
    %290 = vrot.lane.b32.xlu0 %v245, 80
    %v291 = vpop.permute.xlu0 %290
    %292 = vrot.lane.b32.xlu0 %v253, 80
    %v293 = vpop.permute.xlu0 %292
    %298 = vrot.lane.b32.xlu0 %v246, 96
    %v299 = vpop.permute.xlu0 %298
    %300 = vrot.lane.b32.xlu0 %v254, 96
    %v301 = vpop.permute.xlu0 %300
    %306 = vrot.lane.b32.xlu0 %v247, 112
    %v307 = vpop.permute.xlu0 %306
    %308 = vrot.lane.b32.xlu0 %v255, 112
    %v309 = vpop.permute.xlu0 %308
    %vm312 = vcmask 130048
    %v313 = vsel %vm312, %v240, %v259
    %v314 = vsel %vm312, %v248, %v261
    %vm315 = vcmask 261120
    %v316 = vsel %vm315, %v313, %v267
    %v317 = vsel %vm315, %v314, %v269
    %vm318 = vcmask 392192
    %v319 = vsel %vm318, %v316, %v275
    %v320 = vsel %vm318, %v317, %v277
    %vm321 = vcmask 523264
    %v322 = vsel %vm321, %v319, %v283
    %v323 = vsel %vm321, %v320, %v285
    %vm324 = vcmask 654336
    %v325 = vsel %vm324, %v322, %v291
    %v326 = vsel %vm324, %v323, %v293
    %vm327 = vcmask 785408
    %v328 = vsel %vm327, %v325, %v299
    %v329 = vsel %vm327, %v326, %v301
    %vm330 = vcmask 916480
    %v331 = vsel %vm330, %v328, %v307
    %v332 = vsel %vm330, %v329, %v309
    %v334 = vrot.slane %v331, 1
    %335 = vrot.lane.b32.xlu0 %v334, 64
    %v336 = vpop.permute.xlu0 %335
    %v338 = vrot.slane %v331, 2
    %v340 = vrot.slane %v331, 3
    %341 = vrot.lane.b32.xlu0 %v340, 64
    %v342 = vpop.permute.xlu0 %341
    %v344 = vsel %vm321, %v331, %v336
    %v345 = vsel %vm321, %v338, %v342
    %v347 = vrot.slane %v332, 1
    %348 = vrot.lane.b32.xlu0 %v347, 64
    %v349 = vpop.permute.xlu0 %348
    %v351 = vrot.slane %v332, 2
    %v353 = vrot.slane %v332, 3
    %354 = vrot.lane.b32.xlu0 %v353, 64
    %v355 = vpop.permute.xlu0 %354
    %v357 = vsel %vm321, %v332, %v349
    %v358 = vsel %vm321, %v351, %v355
    %v361 = vrot.slane %v357, 7
    %v362 = vrot.slane %v358, 7
    %vm365 = vcmask 1040384
    %v366 = vsel %vm365, %v344, %v361
    %v367 = vsel %vm365, %v345, %v362
    %368 = vrot.lane.b32.xlu0 %v331, 96
    %v369 = vpop.permute.xlu0 %368
    %371 = vrot.lane.b32.xlu0 %v334, 32
    %v372 = vpop.permute.xlu0 %371
    %374 = vrot.lane.b32.xlu0 %v338, 96
    %v375 = vpop.permute.xlu0 %374
    %377 = vrot.lane.b32.xlu0 %v340, 32
    %v378 = vpop.permute.xlu0 %377
    %v380 = vsel %vm321, %v369, %v372
    %v381 = vsel %vm321, %v375, %v378
    %382 = vrot.lane.b32.xlu0 %v332, 96
    %v383 = vpop.permute.xlu0 %382
    %385 = vrot.lane.b32.xlu0 %v347, 32
    %v386 = vpop.permute.xlu0 %385
    %388 = vrot.lane.b32.xlu0 %v351, 96
    %v389 = vpop.permute.xlu0 %388
    %391 = vrot.lane.b32.xlu0 %v353, 32
    %v392 = vpop.permute.xlu0 %391
    %v394 = vsel %vm321, %v383, %v386
    %v395 = vsel %vm321, %v389, %v392
    %v398 = vrot.slane %v394, 7
    %v399 = vrot.slane %v395, 7
    %v402 = vsel %vm365, %v380, %v398
    %v403 = vsel %vm365, %v381, %v399
    %404 = vrot.lane.b32.xlu0 %v331, 64
    %v405 = vpop.permute.xlu0 %404
    %408 = vrot.lane.b32.xlu0 %v338, 64
    %v409 = vpop.permute.xlu0 %408
    %v412 = vsel %vm321, %v405, %v334
    %v413 = vsel %vm321, %v409, %v340
    %414 = vrot.lane.b32.xlu0 %v332, 64
    %v415 = vpop.permute.xlu0 %414
    %418 = vrot.lane.b32.xlu0 %v351, 64
    %v419 = vpop.permute.xlu0 %418
    %v422 = vsel %vm321, %v415, %v347
    %v423 = vsel %vm321, %v419, %v353
    %v426 = vrot.slane %v422, 7
    %v427 = vrot.slane %v423, 7
    %v430 = vsel %vm365, %v412, %v426
    %v431 = vsel %vm365, %v413, %v427
    %v434 = vrot.slane %v344, 2
    %v435 = vrot.slane %v345, 2
    %v438 = vrot.slane %v357, 1
    %v439 = vrot.slane %v358, 1
    %v442 = vsel %vm365, %v434, %v438
    %v443 = vsel %vm365, %v435, %v439
    %v446 = vrot.slane %v380, 2
    %v447 = vrot.slane %v381, 2
    %v450 = vrot.slane %v394, 1
    %v451 = vrot.slane %v395, 1
    %v454 = vsel %vm365, %v446, %v450
    %v455 = vsel %vm365, %v447, %v451
    %v458 = vrot.slane %v412, 2
    %v459 = vrot.slane %v413, 2
    %v462 = vrot.slane %v422, 1
    %v463 = vrot.slane %v423, 1
    %v466 = vsel %vm365, %v458, %v462
    %v467 = vsel %vm365, %v459, %v463
    %v468 = vrot.slane %v344, 4
    %v469 = vrot.slane %v345, 4
    %v472 = vrot.slane %v357, 3
    %v473 = vrot.slane %v358, 3
    %v476 = vsel %vm365, %v468, %v472
    %v477 = vsel %vm365, %v469, %v473
    %v478 = vrot.slane %v380, 4
    %v479 = vrot.slane %v381, 4
    %v482 = vrot.slane %v394, 3
    %v483 = vrot.slane %v395, 3
    %v486 = vsel %vm365, %v478, %v482
    %v487 = vsel %vm365, %v479, %v483
    %v488 = vrot.slane %v412, 4
    %v489 = vrot.slane %v413, 4
    %v492 = vrot.slane %v422, 3
    %v493 = vrot.slane %v423, 3
    %v496 = vsel %vm365, %v488, %v492
    %v497 = vsel %vm365, %v489, %v493
    %v500 = vrot.slane %v402, 6
    %v501 = vrot.slane %v403, 6
    %v506 = vrot.slane %v430, 4
    %v507 = vrot.slane %v431, 4
    %v512 = vrot.slane %v442, 2
    %v513 = vrot.slane %v443, 2
    %v518 = vrot.slane %v466, 6
    %v519 = vrot.slane %v467, 6
    %v524 = vrot.slane %v476, 4
    %v525 = vrot.slane %v477, 4
    %v530 = vrot.slane %v486, 2
    %v531 = vrot.slane %v487, 2
    %vm534 = vcmask 1041408
    %v535 = vsel %vm534, %v366, %v500
    %v536 = vsel %vm534, %v367, %v501
    %vm537 = vcmask 1043456
    %v538 = vsel %vm537, %v535, %v506
    %v539 = vsel %vm537, %v536, %v507
    %vm540 = vcmask 1045504
    %v541 = vsel %vm540, %v538, %v512
    %v542 = vsel %vm540, %v539, %v513
    %v543 = vsel %vm534, %v454, %v518
    %v544 = vsel %vm534, %v455, %v519
    %v545 = vsel %vm537, %v543, %v524
    %v546 = vsel %vm537, %v544, %v525
    %v547 = vsel %vm540, %v545, %v530
    %v548 = vsel %vm540, %v546, %v531
    %v549 = vld [vmem:[%s3] sm:$0xff]
    %v550 = vld [vmem:[%s3 + $0x8] sm:$0xff]
    %v551 = vld [vmem:[%s3 + $0x10] sm:$0xff]
    %v552 = vld [vmem:[%s3 + $0x18] sm:$0xff]
    %v553 = vld [vmem:[%s3 + $0x20] sm:$0xff]
    %v554 = vld [vmem:[%s3 + $0x28] sm:$0xff]
    %v555 = vld [vmem:[%s3 + $0x30] sm:$0xff]
    %v556 = vld [vmem:[%s3 + $0x38] sm:$0xff]
    %v557 = vld [vmem:[%s3 + $0x40] sm:$0xff]
    %v558 = vld [vmem:[%s3 + $0x48] sm:$0xff]
    %v559 = vld [vmem:[%s3 + $0x50] sm:$0xff]
    %v560 = vld [vmem:[%s3 + $0x58] sm:$0xff]
    %v561 = vld [vmem:[%s3 + $0x60] sm:$0xff]
    %v562 = vld [vmem:[%s3 + $0x68] sm:$0xff]
    %v563 = vld [vmem:[%s3 + $0x70] sm:$0xff]
    %v564 = vld [vmem:[%s3 + $0x78] sm:$0xff]
    %v565 = vld [vmem:[%s3 + $0x80] sm:$0xff]
    %v566 = vld [vmem:[%s3 + $0x88] sm:$0xff]
    %v567 = vld [vmem:[%s3 + $0x90] sm:$0xff]
    %v568 = vld [vmem:[%s3 + $0x98] sm:$0xff]
    %v569 = vld [vmem:[%s3 + $0xa0] sm:$0xff]
    %v570 = vld [vmem:[%s3 + $0xa8] sm:$0xff]
    %v571 = vld [vmem:[%s3 + $0xb0] sm:$0xff]
    %v572 = vld [vmem:[%s3 + $0xb8] sm:$0xff]
    %v573 = vld [vmem:[%s3 + $0xc0] sm:$0xff]
    %v574 = vld [vmem:[%s3 + $0xc8] sm:$0xff]
    %v575 = vld [vmem:[%s3 + $0xd0] sm:$0xff]
    %v576 = vld [vmem:[%s3 + $0xd8] sm:$0xff]
    %v577 = vld [vmem:[%s3 + $0xe0] sm:$0xff]
    %v578 = vld [vmem:[%s3 + $0xe8] sm:$0xff]
    %v579 = vld [vmem:[%s3 + $0xf0] sm:$0xff]
    %v580 = vld [vmem:[%s3 + $0xf8] sm:$0xff]
    %v581 = vld [vmem:[%s4] sm:$0x1]
    %v583 = vperm.slane %v581, 0
    %585 = vmatpush.msra.mxu0 %v564
    %586 = vmatpush.msra.mxu0 %v563
    %587 = vmatpush.msra.mxu0 %v562
    %588 = vmatpush.msra.mxu0 %v561
    %589 = vmatpush.msra.mxu0 %v560
    %590 = vmatpush.msra.mxu0 %v559
    %591 = vmatpush.msra.mxu0 %v558
    %592 = vmatpush.msra.mxu0 %v557
    %593 = vmatpush.msra.mxu0 %v556
    %594 = vmatpush.msra.mxu0 %v555
    %595 = vmatpush.msra.mxu0 %v554
    %596 = vmatpush.msra.mxu0 %v553
    %597 = vmatpush.msra.mxu0 %v552
    %598 = vmatpush.msra.mxu0 %v551
    %599 = vmatpush.msra.mxu0 %v550
    %600 = vmatpush.msra.mxu0 %v549
    %601 = vmatmul.f32.gmra.mxu0 %v541
    %v602 = vpop.f32.mrf.mxu0
    %v603 = vadd.f32 %v583, %v602
    %604 = vmatmul.f32.gmra.mxu0 %v547
    %v605 = vpop.f32.mrf.mxu0
    %v606 = vadd.f32 %v583, %v605
    %607 = vmatmul.f32.gmra.mxu0 %v496
    %v608 = vpop.f32.mrf.mxu0
    %v609 = vadd.f32 %v583, %v608
    %610 = vdwg.mxu0
    %611 = vmatpush.msra.mxu0 %v580
    %612 = vmatpush.msra.mxu0 %v579
    %613 = vmatpush.msra.mxu0 %v578
    %614 = vmatpush.msra.mxu0 %v577
    %615 = vmatpush.msra.mxu0 %v576
    %616 = vmatpush.msra.mxu0 %v575
    %617 = vmatpush.msra.mxu0 %v574
    %618 = vmatpush.msra.mxu0 %v573
    %619 = vmatpush.msra.mxu0 %v572
    %620 = vmatpush.msra.mxu0 %v571
    %621 = vmatpush.msra.mxu0 %v570
    %622 = vmatpush.msra.mxu0 %v569
    %623 = vmatpush.msra.mxu0 %v568
    %624 = vmatpush.msra.mxu0 %v567
    %625 = vmatpush.msra.mxu0 %v566
    %626 = vmatpush.msra.mxu0 %v565
    %627 = vmatmul.f32.gmra.mxu0 %v542
    %v628 = vpop.f32.mrf.mxu0
    %v629 = vadd.f32 %v603, %v628
    %630 = vmatmul.f32.gmra.mxu0 %v548
    %v631 = vpop.f32.mrf.mxu0
    %v632 = vadd.f32 %v606, %v631
    %633 = vmatmul.f32.gmra.mxu0 %v497
    %v634 = vpop.f32.mrf.mxu0
    %v635 = vadd.f32 %v609, %v634
    %636 = vdwg.mxu0
    %v637 = vmax.f32 %v629, 0.0
    %v638 = vmax.f32 %v632, 0.0
    %v639 = vmax.f32 %v635, 0.0
    %v641 = vrot.slane %v637, 2
    %642 = vrot.lane.b32.xlu0 %v641, 32
    %v643 = vpop.permute.xlu0 %642
    %v645 = vrot.slane %v637, 4
    %646 = vrot.lane.b32.xlu0 %v645, 64
    %v647 = vpop.permute.xlu0 %646
    %v649 = vrot.slane %v637, 6
    %650 = vrot.lane.b32.xlu0 %v649, 96
    %v651 = vpop.permute.xlu0 %650
    %v654 = vrot.slane %v638, 2
    %655 = vrot.lane.b32.xlu0 %v654, 32
    %v656 = vpop.permute.xlu0 %655
    %v658 = vrot.slane %v638, 4
    %659 = vrot.lane.b32.xlu0 %v658, 64
    %v660 = vpop.permute.xlu0 %659
    %v662 = vrot.slane %v638, 6
    %663 = vrot.lane.b32.xlu0 %v662, 96
    %v664 = vpop.permute.xlu0 %663
    %v666 = vsel %vm315, %v637, %v643
    %v667 = vsel %vm321, %v666, %v647
    %v668 = vsel %vm327, %v667, %v651
    %v669 = vsel %vm315, %v638, %v656
    %v670 = vsel %vm321, %v669, %v660
    %v671 = vsel %vm327, %v670, %v664
    %v672 = vld [vmem:[%s5] sm:$0xff]
    %v673 = vld [vmem:[%s5 + $0x8] sm:$0xff]
    %v674 = vld [vmem:[%s5 + $0x10] sm:$0xff]
    %v675 = vld [vmem:[%s5 + $0x18] sm:$0xff]
    %v676 = vld [vmem:[%s5 + $0x20] sm:$0xff]
    %v677 = vld [vmem:[%s5 + $0x28] sm:$0xff]
    %v678 = vld [vmem:[%s5 + $0x30] sm:$0xff]
    %v679 = vld [vmem:[%s5 + $0x38] sm:$0xff]
    %v680 = vld [vmem:[%s5 + $0x40] sm:$0xff]
    %v681 = vld [vmem:[%s5 + $0x48] sm:$0xff]
    %v682 = vld [vmem:[%s5 + $0x50] sm:$0xff]
    %v683 = vld [vmem:[%s5 + $0x58] sm:$0xff]
    %v684 = vld [vmem:[%s5 + $0x60] sm:$0xff]
    %v685 = vld [vmem:[%s5 + $0x68] sm:$0xff]
    %v686 = vld [vmem:[%s5 + $0x70] sm:$0xff]
    %v687 = vld [vmem:[%s5 + $0x78] sm:$0xff]
    %v688 = vld [vmem:[%s5 + $0x80] sm:$0xff]
    %v689 = vld [vmem:[%s5 + $0x88] sm:$0xff]
    %v690 = vld [vmem:[%s5 + $0x90] sm:$0xff]
    %v691 = vld [vmem:[%s5 + $0x98] sm:$0xff]
    %v692 = vld [vmem:[%s5 + $0xa0] sm:$0xff]
    %v693 = vld [vmem:[%s5 + $0xa8] sm:$0xff]
    %v694 = vld [vmem:[%s5 + $0xb0] sm:$0xff]
    %v695 = vld [vmem:[%s5 + $0xb8] sm:$0xff]
    %v696 = vld [vmem:[%s5 + $0xc0] sm:$0xff]
    %v697 = vld [vmem:[%s5 + $0xc8] sm:$0xff]
    %v698 = vld [vmem:[%s5 + $0xd0] sm:$0xff]
    %v699 = vld [vmem:[%s5 + $0xd8] sm:$0xff]
    %v700 = vld [vmem:[%s5 + $0xe0] sm:$0xff]
    %v701 = vld [vmem:[%s5 + $0xe8] sm:$0xff]
    %v702 = vld [vmem:[%s5 + $0xf0] sm:$0xff]
    %v703 = vld [vmem:[%s5 + $0xf8] sm:$0xff]
    %v704 = vld [vmem:[%s5 + $0x100] sm:$0xff]
    %v705 = vld [vmem:[%s5 + $0x108] sm:$0xff]
    %v706 = vld [vmem:[%s5 + $0x110] sm:$0xff]
    %v707 = vld [vmem:[%s5 + $0x118] sm:$0xff]
    %v708 = vld [vmem:[%s6] sm:$0x1]
    %v710 = vperm.slane %v708, 0
    %v713 = vsel %vm315, %v639, 0
    %715 = vmatpush.msra.mxu0 %v687
    %716 = vmatpush.msra.mxu0 %v686
    %717 = vmatpush.msra.mxu0 %v685
    %718 = vmatpush.msra.mxu0 %v684
    %719 = vmatpush.msra.mxu0 %v683
    %720 = vmatpush.msra.mxu0 %v682
    %721 = vmatpush.msra.mxu0 %v681
    %722 = vmatpush.msra.mxu0 %v680
    %723 = vmatpush.msra.mxu0 %v679
    %724 = vmatpush.msra.mxu0 %v678
    %725 = vmatpush.msra.mxu0 %v677
    %726 = vmatpush.msra.mxu0 %v676
    %727 = vmatpush.msra.mxu0 %v675
    %728 = vmatpush.msra.mxu0 %v674
    %729 = vmatpush.msra.mxu0 %v673
    %730 = vmatpush.msra.mxu0 %v672
    %731 = vmatmul.f32.gmra.mxu0 %v668
    %v732 = vpop.f32.mrf.mxu0
    %v733 = vadd.f32 %v710, %v732
    %734 = vdwg.mxu0
    %735 = vmatpush.msra.mxu0 %v703
    %736 = vmatpush.msra.mxu0 %v702
    %737 = vmatpush.msra.mxu0 %v701
    %738 = vmatpush.msra.mxu0 %v700
    %739 = vmatpush.msra.mxu0 %v699
    %740 = vmatpush.msra.mxu0 %v698
    %741 = vmatpush.msra.mxu0 %v697
    %742 = vmatpush.msra.mxu0 %v696
    %743 = vmatpush.msra.mxu0 %v695
    %744 = vmatpush.msra.mxu0 %v694
    %745 = vmatpush.msra.mxu0 %v693
    %746 = vmatpush.msra.mxu0 %v692
    %747 = vmatpush.msra.mxu0 %v691
    %748 = vmatpush.msra.mxu0 %v690
    %749 = vmatpush.msra.mxu0 %v689
    %750 = vmatpush.msra.mxu0 %v688
    %751 = vmatmul.f32.gmra.mxu0 %v671
    %v752 = vpop.f32.mrf.mxu0
    %v753 = vadd.f32 %v733, %v752
    %754 = vdwg.mxu0
    %755 = vmatpush.msra.mxu0 0.0
    %756 = vmatpush.msra.mxu0 0.0
    %757 = vmatpush.msra.mxu0 0.0
    %758 = vmatpush.msra.mxu0 0.0
    %759 = vmatpush.msra.mxu0 0.0
    %760 = vmatpush.msra.mxu0 0.0
    %761 = vmatpush.msra.mxu0 0.0
    %762 = vmatpush.msra.mxu0 0.0
    %763 = vmatpush.msra.mxu0 0.0
    %764 = vmatpush.msra.mxu0 0.0
    %765 = vmatpush.msra.mxu0 0.0
    %766 = vmatpush.msra.mxu0 0.0
    %767 = vmatpush.msra.mxu0 %v707
    %768 = vmatpush.msra.mxu0 %v706
    %769 = vmatpush.msra.mxu0 %v705
    %770 = vmatpush.msra.mxu0 %v704
    %771 = vmatmul.f32.gmra.mxu0 %v713
    %v772 = vpop.f32.mrf.mxu0
    %v773 = vadd.f32 %v753, %v772
    %774 = vdwg.mxu0
    %v775 = vmax.f32 %v773, 0.0
    %v776 = vld [vmem:[%s7] sm:$0xff]
    %v777 = vld [vmem:[%s7 + $0x8] sm:$0xff]
    %v778 = vld [vmem:[%s7 + $0x10] sm:$0xff]
    %v779 = vld [vmem:[%s7 + $0x18] sm:$0xff]
    %v780 = vld [vmem:[%s8] sm:$0x1]
    %v782 = vperm.slane %v780, 0
    %v785 = vsel %vm315, %v775, 0
    %787 = vmatpush.msra.mxu0 0.0
    %788 = vmatpush.msra.mxu0 0.0
    %789 = vmatpush.msra.mxu0 0.0
    %790 = vmatpush.msra.mxu0 0.0
    %791 = vmatpush.msra.mxu0 0.0
    %792 = vmatpush.msra.mxu0 0.0
    %793 = vmatpush.msra.mxu0 0.0
    %794 = vmatpush.msra.mxu0 0.0
    %795 = vmatpush.msra.mxu0 0.0
    %796 = vmatpush.msra.mxu0 0.0
    %797 = vmatpush.msra.mxu0 0.0
    %798 = vmatpush.msra.mxu0 0.0
    %799 = vmatpush.msra.mxu0 %v779
    %800 = vmatpush.msra.mxu0 %v778
    %801 = vmatpush.msra.mxu0 %v777
    %802 = vmatpush.msra.mxu0 %v776
    %803 = vmatmul.f32.gmra.mxu0 %v785
    %v804 = vpop.f32.mrf.mxu0
    %v805 = vadd.f32 %v782, %v804
    %806 = vdwg.mxu0
    %v807 = vmax.f32 %v805, 0.0
    %v808 = vld [vmem:[%s9] sm:$0xff]
    %v809 = vld [vmem:[%s9 + $0x8] sm:$0xff]
    %v810 = vld [vmem:[%s9 + $0x10] sm:$0xff]
    %v811 = vld [vmem:[%s9 + $0x18] sm:$0xff]
    %v812 = vld [vmem:[%s9 + $0x20] sm:$0xff]
    %v813 = vld [vmem:[%s9 + $0x28] sm:$0xff]
    %v814 = vld [vmem:[%s9 + $0x30] sm:$0xff]
    %v815 = vld [vmem:[%s9 + $0x38] sm:$0xff]
    %v816 = vld [vmem:[%s10] sm:$0x1]
    %v818 = vperm.slane %v816, 0
    %v821 = vsel %vm321, %v807, 0
    %823 = vmatpush.msra.mxu0 0.0
    %824 = vmatpush.msra.mxu0 0.0
    %825 = vmatpush.msra.mxu0 0.0
    %826 = vmatpush.msra.mxu0 0.0
    %827 = vmatpush.msra.mxu0 0.0
    %828 = vmatpush.msra.mxu0 0.0
    %829 = vmatpush.msra.mxu0 0.0
    %830 = vmatpush.msra.mxu0 0.0
    %831 = vmatpush.msra.mxu0 %v815
    %832 = vmatpush.msra.mxu0 %v814
    %833 = vmatpush.msra.mxu0 %v813
    %834 = vmatpush.msra.mxu0 %v812
    %835 = vmatpush.msra.mxu0 %v811
    %836 = vmatpush.msra.mxu0 %v810
    %837 = vmatpush.msra.mxu0 %v809
    %838 = vmatpush.msra.mxu0 %v808
    %839 = vmatmul.f32.gmra.mxu0 %v821
    %v840 = vpop.f32.mrf.mxu0
    %v841 = vadd.f32 %v818, %v840
    %842 = vdwg.mxu0
    %844 = vrot.lane.b32.xlu0 %v841, 120
    %v845 = vpop.permute.xlu0 %844
    %v847 = vadd.f32 %v841, %v845
    %848 = vrot.lane.b32.xlu0 %v841, 112
    %v849 = vpop.permute.xlu0 %848
    %v851 = vadd.f32 %v847, %v849
    %852 = vrot.lane.b32.xlu0 %v841, 104
    %v853 = vpop.permute.xlu0 %852
    %v855 = vadd.f32 %v851, %v853
    %v856 = vmul.f32 %v855, 0.25
    %858 = vrot.lane.b32.xlu0 %v856, 32
    %v859 = vpop.permute.xlu0 %858
    %v861 = vsub.f32 %v841, %v859
    %863 = vrot.lane.b32.xlu0 %v861, 96
    %v864 = vpop.permute.xlu0 %863
    %866 = vrot.lane.b32.xlu0 %v861, 104
    %v867 = vpop.permute.xlu0 %866
    %869 = vrot.lane.b32.xlu0 %v861, 112
    %v870 = vpop.permute.xlu0 %869
    %872 = vrot.lane.b32.xlu0 %v861, 120
    %v873 = vpop.permute.xlu0 %872
    %vm875 = vcmask 64512
    %v876 = vsel %vm875, %v864, %v867
    %v877 = vsel %vm312, %v876, %v870
    %vm878 = vcmask 195584
    %v879 = vsel %vm878, %v877, %v873
    %v880 = vadd.f32 %v841, %v879
    %vm881 = vcmask 58368
    %v882 = vsel %vm881, %v880, -inf
    %883 = vmax.xlane.f32.xlu0 %v882
    %v884 = vpop.xlane.xlu0 %883
    %vm885 = vcmask 123968
    %v886 = vsel %vm885, %v880, -inf
    %887 = vmax.xlane.f32.xlu0 %v886
    %v888 = vpop.xlane.xlu0 %887
    %vm889 = vcmask 189568
    %v890 = vsel %vm889, %v880, -inf
    %891 = vmax.xlane.f32.xlu0 %v890
    %v892 = vpop.xlane.xlu0 %891
    %vm893 = vcmask 255168
    %v894 = vsel %vm893, %v880, -inf
    %895 = vmax.xlane.f32.xlu0 %v894
    %v896 = vpop.xlane.xlu0 %895
    %v897 = vsel %vm875, %v884, %v888
    %v898 = vsel %vm312, %v897, %v892
    %v899 = vsel %vm878, %v898, %v896
    %v900 = vsub.f32 %v880, %v899
    %v901 = vmul.f32 %v900, 1.442695
    %v902 = vpow.pop %v901
    %v903 = vld [vmem:[%s11] sm:$0x1]
    %v904 = vsel %vm881, %v902, 0.0
    %905 = vadd.xlane.f32.xlu0 %v904
    %v906 = vpop.xlane.xlu0 %905
    %v907 = vrcp.pop %v906
    %v908 = vmul.f32 %v902, %v907
    %v909 = vmax.f32 %v908, 0.001
    %v911 = vperm.slane %v903, 0
    %v913 = vmul.f32 %v909, %v911
    %v914 = vsel %vm881, %v913, 0.0
    %915 = vadd.xlane.f32.xlu0 %v914
    %v916 = vpop.xlane.xlu0 %915
    %918 = vrot.lane.b32.xlu0 %v902, 120
    %v919 = vpop.permute.xlu0 %918
    %v921 = vsel %vm881, %v919, 0.0
    %922 = vadd.xlane.f32.xlu0 %v921
    %v923 = vpop.xlane.xlu0 %922
    %v924 = vrcp.pop %v923
    %v925 = vmul.f32 %v902, %v924
    %v926 = vmax.f32 %v925, 0.001
    %927 = vrot.lane.b32.xlu0 %v911, 8
    %v928 = vpop.permute.xlu0 %927
    %v930 = vmul.f32 %v926, %v928
    %932 = vrot.lane.b32.xlu0 %v930, 120
    %v933 = vpop.permute.xlu0 %932
    %v935 = vsel %vm881, %v933, 0.0
    %936 = vadd.xlane.f32.xlu0 %v935
    %v937 = vpop.xlane.xlu0 %936
    %938 = vrot.lane.b32.xlu0 %v902, 112
    %v939 = vpop.permute.xlu0 %938
    %v941 = vsel %vm881, %v939, 0.0
    %942 = vadd.xlane.f32.xlu0 %v941
    %v943 = vpop.xlane.xlu0 %942
    %v944 = vrcp.pop %v943
    %v945 = vmul.f32 %v902, %v944
    %v946 = vmax.f32 %v945, 0.001
    %947 = vrot.lane.b32.xlu0 %v911, 16
    %v948 = vpop.permute.xlu0 %947
    %v950 = vmul.f32 %v946, %v948
    %952 = vrot.lane.b32.xlu0 %v950, 112
    %v953 = vpop.permute.xlu0 %952
    %v955 = vsel %vm881, %v953, 0.0
    %956 = vadd.xlane.f32.xlu0 %v955
    %v957 = vpop.xlane.xlu0 %956
    %958 = vrot.lane.b32.xlu0 %v902, 104
    %v959 = vpop.permute.xlu0 %958
    %v961 = vsel %vm881, %v959, 0.0
    %962 = vadd.xlane.f32.xlu0 %v961
    %v963 = vpop.xlane.xlu0 %962
    %v964 = vrcp.pop %v963
    %v965 = vmul.f32 %v902, %v964
    %v966 = vmax.f32 %v965, 0.001
    %967 = vrot.lane.b32.xlu0 %v911, 24
    %v968 = vpop.permute.xlu0 %967
    %v970 = vmul.f32 %v966, %v968
    %972 = vrot.lane.b32.xlu0 %v970, 104
    %v973 = vpop.permute.xlu0 %972
    %v975 = vsel %vm881, %v973, 0.0
    %976 = vadd.xlane.f32.xlu0 %v975
    %v977 = vpop.xlane.xlu0 %976
    %vm978 = vcmask 7168
    %v979 = vsel %vm978, %v916, %v937
    %vm980 = vcmask 15360
    %v981 = vsel %vm980, %v979, %v957
    %vm982 = vcmask 23552
    %v983 = vsel %vm982, %v981, %v977
    %vm984 = vcmask 25600
    %985 = vst.msk [vmem:[#allocation2] sm:$0x3] %vm984, %v983
    // Predicated region
    $region50: #{convnet_forward.1} parent=1 // pred_check
      _
    $region51: #{convnet_forward.1} parent=1 // pred_check_branch
      %987 = sbr.rel (0) target = $region53
    $region52: #{convnet_forward.1} parent=1 // pred_region
      %989 = vsyncadd [#allocation3], 0
      %s991 = sshll.u32 [#allocation2], 4
      %s992 = int_to_ptr.vmem [resolvable:$true] %s991
      %s993 = sshll.u32 %s12, 4
      %s994 = int_to_ptr.hbm [resolvable:$true] %s993
      %996 = dma.vmem_to_hbm [thread:$0]  %s992, 32, %s994, [#allocation3]
    $region53: #{convnet_forward.1} parent=1 // pred_fallthru
      _
    // Predicated region
    $region54: #{convnet_forward.1} parent=1 // pred_check
      _
    $region55: #{convnet_forward.1} parent=1 // pred_check_branch
      %998 = sbr.rel (0) target = $region57
    $region56: #{convnet_forward.1} parent=1 // pred_region
      %1000 = dma.done [#allocation3], 32
    $region57: #{convnet_forward.1} parent=1 // pred_fallthru
      _
    %1001 = vsyncpa [#allocation3], 1

</llo_original>
